<compile_context>
chip_gen: v7x
topology: tpu7x:2x2x1
jax: 0.10.0
libtpu: 0.0.40
codegen_flags: <defaults>
</compile_context>

<pallas_src>
import functools

import jax
import jax.numpy as jnp
from jax.experimental import pallas as pl
from jax.experimental.pallas import tpu as pltpu


# --------------------------------------------------------------------------- #
# Fused kernel: 3x3 conv (9 shifted matmuls) + bias + ReLU + masked GAP + fc
# --------------------------------------------------------------------------- #
def _fused_conv_pool_fc_kernel(x_ref, wt_ref, cb_ref, fw_ref, fb_ref, mask_ref,
                               o_ref, *, h, w, wp):
    # x_ref   : (1, C, Hp*Wp + 2) padded image, flat spatial on lanes
    # wt_ref  : (9, Cout, C)      tap-ordered conv weights (normalization folded)
    # cb_ref  : (Cout, 1)         conv bias (normalization folded)
    # fw_ref  : (numclass, Cout)  fc weight
    # fb_ref  : (numclass, 1)     fc bias
    # mask_ref: (1, H*Wp)         validity mask with 1/(H*W) pooling scale folded
    # o_ref   : (1, numclass, 1)  logits for this image
    l_out = h * wp
    acc = None
    for t in range(9):                       # statically unrolled 3x3 taps
        di, dj = t // 3, t % 3
        d = di * wp + dj                     # static lane offset of this tap
        slab = x_ref[0, :, d:d + l_out]      # (C, H*Wp) shifted view
        part = jnp.dot(wt_ref[t], slab, preferred_element_type=jnp.float32)
        acc = part if acc is None else acc + part          # (Cout, H*Wp)
    hact = jnp.maximum(acc + cb_ref[...], 0.0)              # conv bias + ReLU
    # masked global average pool (mask zeroes the Wp-W pad columns and carries 1/(H*W))
    feat = jnp.sum(hact * mask_ref[...], axis=-1, keepdims=True)   # (Cout, 1)
    o_ref[0] = (jnp.dot(fw_ref[...], feat, preferred_element_type=jnp.float32)
                + fb_ref[...])                                      # (numclass, 1)


def network_forward(x, params):
    """Equivalent of `network.forward(x)`: normalize -> feature -> fc."""
    n, c, h, w = x.shape
    hp, wp = h + 2, w + 2
    l_out = h * wp                 # flat spatial extent covering all output rows
    lp = hp * wp + 2               # + 2 slack lanes so every tap slice is in-bounds

    mean = params["mean"].astype(jnp.float32)
    std = params["std"].astype(jnp.float32)
    conv_w = params["conv_w"].astype(jnp.float32)          # (Cout, C, 3, 3)
    conv_b = params["conv_b"].astype(jnp.float32)          # (Cout,)
    fc_w = params["fc_w"].astype(jnp.float32)              # (numclass, Cout)
    fc_b = params["fc_b"].astype(jnp.float32)              # (numclass,)
    cout = conv_w.shape[0]
    numclass = fc_w.shape[0]

    # ---- trace-time folding of the per-channel normalization into the conv ----
    inv_std = 1.0 / std
    w_fold = conv_w * inv_std.reshape(1, c, 1, 1)
    b_fold = conv_b - jnp.sum(conv_w * (mean * inv_std).reshape(1, c, 1, 1),
                              axis=(1, 2, 3))
    wt = jnp.transpose(w_fold, (2, 3, 0, 1)).reshape(9, cout, c)   # tap-major
    cb = b_fold.reshape(cout, 1)
    fb = fc_b.reshape(numclass, 1)

    # Pad the raw image with the per-channel mean (== zero in normalized space),
    # flatten spatial, and add 2 slack lanes for the largest tap shift.
    xpad = jnp.broadcast_to(mean.reshape(1, c, 1, 1), (n, c, hp, wp))
    xpad = jax.lax.dynamic_update_slice(xpad, x.astype(jnp.float32), (0, 0, 1, 1))
    x_flat = jnp.pad(xpad.reshape(n, c, hp * wp), ((0, 0), (0, 0), (0, 2)))

    # Validity mask over flat positions p = row*Wp + col (col < W valid),
    # with the 1/(H*W) pooling scale folded in.
    col = jnp.arange(l_out, dtype=jnp.int32) % wp
    mask = jnp.where(col < w, 1.0 / (h * w), 0.0).astype(jnp.float32)
    mask = mask.reshape(1, l_out)

    kernel = functools.partial(_fused_conv_pool_fc_kernel, h=h, w=w, wp=wp)
    out = pl.pallas_call(
        kernel,
        grid=(n,),
        in_specs=[
            pl.BlockSpec((1, c, lp), lambda i: (i, 0, 0)),          # per-image block
            pl.BlockSpec((9, cout, c), lambda i: (0, 0, 0)),        # resident weights
            pl.BlockSpec((cout, 1), lambda i: (0, 0)),
            pl.BlockSpec((numclass, cout), lambda i: (0, 0)),
            pl.BlockSpec((numclass, 1), lambda i: (0, 0)),
            pl.BlockSpec((1, l_out), lambda i: (0, 0)),
        ],
        out_specs=pl.BlockSpec((1, numclass, 1), lambda i: (i, 0, 0)),
        out_shape=jax.ShapeDtypeStruct((n, numclass, 1), jnp.float32),
        compiler_params=pltpu.CompilerParams(
            dimension_semantics=("parallel",)),                      # 2 TCs on v7x
    )(x_flat, wt, cb, fc_w, fb, mask)
    return out.reshape(n, numclass)


# --------------------------------------------------------------------------- #
# Pure-JAX reference (same math) for a correctness check
# --------------------------------------------------------------------------- #
def _reference_forward(x, params):
    mean = params["mean"].reshape(1, -1, 1, 1)
    std = params["std"].reshape(1, -1, 1, 1)
    xn = (x - mean) / std
    y = jax.lax.conv_general_dilated(
        xn, params["conv_w"], window_strides=(1, 1), padding=((1, 1), (1, 1)),
        dimension_numbers=("NCHW", "OIHW", "NCHW"))
    y = jnp.maximum(y + params["conv_b"].reshape(1, -1, 1, 1), 0.0)
    feat = y.mean(axis=(2, 3))
    return feat @ params["fc_w"].T + params["fc_b"]


def make_params(numclass=10, cin=3, cout=32):
    key = jax.random.PRNGKey(0)
    k1, k2, k3, k4 = jax.random.split(key, 4)
    return {
        "mean": jnp.array([0.5071, 0.4867, 0.4408], dtype=jnp.float32),
        "std": jnp.array([0.2675, 0.2565, 0.2761], dtype=jnp.float32),
        # feature extractor: Conv2d(cin, cout, 3, padding=1) + ReLU + global avg pool
        "conv_w": 0.1 * jax.random.normal(k1, (cout, cin, 3, 3), dtype=jnp.float32),
        "conv_b": 0.1 * jax.random.normal(k2, (cout,), dtype=jnp.float32),
        # fc: Linear(cout, numclass)
        "fc_w": 0.1 * jax.random.normal(k3, (numclass, cout), dtype=jnp.float32),
        "fc_b": 0.1 * jax.random.normal(k4, (numclass,), dtype=jnp.float32),
    }


if __name__ == "__main__":
    N, C, H, W = 2, 3, 16, 16
    NUMCLASS = 10
    params = make_params(numclass=NUMCLASS, cin=C)

    x = jax.random.uniform(jax.random.PRNGKey(0), (N, C, H, W), dtype=jnp.float32)

    out = jax.block_until_ready(jax.jit(network_forward)(x, params))
    ref = jax.block_until_ready(_reference_forward(x, params))

    assert out.shape == (N, NUMCLASS)
    assert jnp.allclose(out, ref, rtol=1e-3, atol=1e-3)

    print("KERNEL_OK")
</pallas_src>

<mosaic_0001>
module attributes {stable_mosaic.version = 11 : i64} {
  func.func @_fused_conv_pool_fc_kernel(%arg0: i32, %arg1: memref<1x3x326xf32, #tpu.memory_space<vmem>>, %arg2: memref<9x32x3xf32, #tpu.memory_space<vmem>>, %arg3: memref<32x1xf32, #tpu.memory_space<vmem>>, %arg4: memref<10x32xf32, #tpu.memory_space<vmem>>, %arg5: memref<10x1xf32, #tpu.memory_space<vmem>>, %arg6: memref<1x288xf32, #tpu.memory_space<vmem>>, %arg7: memref<1x10x1xf32, #tpu.memory_space<vmem>>) attributes {dimension_semantics = [#tpu.dimension_semantics<parallel>], iteration_bounds = array<i64: 2>, scalar_prefetch = 0 : i64, scratch_operands = 0 : i64, tpu.core_type = #tpu.core_type<tc>, window_params = [{transform_indices = @transform_0, window_bounds = array<i64: 1, 3, 326>}, {pipeline_mode = #tpu.pipeline_mode<synchronous>, transform_indices = @transform_1, window_bounds = array<i64: 9, 32, 3>}, {pipeline_mode = #tpu.pipeline_mode<synchronous>, transform_indices = @transform_2, window_bounds = array<i64: 32, 1>}, {pipeline_mode = #tpu.pipeline_mode<synchronous>, transform_indices = @transform_3, window_bounds = array<i64: 10, 32>}, {pipeline_mode = #tpu.pipeline_mode<synchronous>, transform_indices = @transform_4, window_bounds = array<i64: 10, 1>}, {pipeline_mode = #tpu.pipeline_mode<synchronous>, transform_indices = @transform_5, window_bounds = array<i64: 1, 288>}, {transform_indices = @transform_6, window_bounds = array<i64: 1, 10, 1>}]} {
    %c0 = arith.constant 0 : index
    %c0_0 = arith.constant 0 : index
    %c0_1 = arith.constant 0 : index
    %0 = vector.load %arg1[%c0, %c0_0, %c0_1] : memref<1x3x326xf32, #tpu.memory_space<vmem>>, vector<1x3x288xf32>
    %1 = vector.shape_cast %0 : vector<1x3x288xf32> to vector<3x288xf32>
    %c0_2 = arith.constant 0 : index
    %c0_3 = arith.constant 0 : index
    %c0_4 = arith.constant 0 : index
    %2 = vector.load %arg2[%c0_2, %c0_3, %c0_4] : memref<9x32x3xf32, #tpu.memory_space<vmem>>, vector<1x32x3xf32>
    %3 = vector.shape_cast %2 : vector<1x32x3xf32> to vector<32x3xf32>
    %cst = arith.constant dense<0.000000e+00> : vector<32x288xf32>
    %4 = tpu.matmul %3, %1, %cst {dimension_numbers = #tpu.dot_dimension_numbers<[1], [0], [0], [1], [0, 0, 1, 1], [], []>} : vector<32x3xf32>, vector<3x288xf32>, vector<32x288xf32> -> vector<32x288xf32>
    %c0_5 = arith.constant 0 : index
    %c0_6 = arith.constant 0 : index
    %c1 = arith.constant 1 : index
    %5 = vector.load %arg1[%c0_5, %c0_6, %c1] : memref<1x3x326xf32, #tpu.memory_space<vmem>>, vector<1x3x288xf32>
    %6 = vector.shape_cast %5 : vector<1x3x288xf32> to vector<3x288xf32>
    %c1_7 = arith.constant 1 : index
    %c0_8 = arith.constant 0 : index
    %c0_9 = arith.constant 0 : index
    %7 = vector.load %arg2[%c1_7, %c0_8, %c0_9] : memref<9x32x3xf32, #tpu.memory_space<vmem>>, vector<1x32x3xf32>
    %8 = vector.shape_cast %7 : vector<1x32x3xf32> to vector<32x3xf32>
    %cst_10 = arith.constant dense<0.000000e+00> : vector<32x288xf32>
    %9 = tpu.matmul %8, %6, %cst_10 {dimension_numbers = #tpu.dot_dimension_numbers<[1], [0], [0], [1], [0, 0, 1, 1], [], []>} : vector<32x3xf32>, vector<3x288xf32>, vector<32x288xf32> -> vector<32x288xf32>
    %10 = arith.addf %4, %9 : vector<32x288xf32>
    %c0_11 = arith.constant 0 : index
    %c0_12 = arith.constant 0 : index
    %c2 = arith.constant 2 : index
    %11 = vector.load %arg1[%c0_11, %c0_12, %c2] : memref<1x3x326xf32, #tpu.memory_space<vmem>>, vector<1x3x288xf32>
    %12 = vector.shape_cast %11 : vector<1x3x288xf32> to vector<3x288xf32>
    %c2_13 = arith.constant 2 : index
    %c0_14 = arith.constant 0 : index
    %c0_15 = arith.constant 0 : index
    %13 = vector.load %arg2[%c2_13, %c0_14, %c0_15] : memref<9x32x3xf32, #tpu.memory_space<vmem>>, vector<1x32x3xf32>
    %14 = vector.shape_cast %13 : vector<1x32x3xf32> to vector<32x3xf32>
    %cst_16 = arith.constant dense<0.000000e+00> : vector<32x288xf32>
    %15 = tpu.matmul %14, %12, %cst_16 {dimension_numbers = #tpu.dot_dimension_numbers<[1], [0], [0], [1], [0, 0, 1, 1], [], []>} : vector<32x3xf32>, vector<3x288xf32>, vector<32x288xf32> -> vector<32x288xf32>
    %16 = arith.addf %10, %15 : vector<32x288xf32>
    %c0_17 = arith.constant 0 : index
    %c0_18 = arith.constant 0 : index
    %c18 = arith.constant 18 : index
    %17 = vector.load %arg1[%c0_17, %c0_18, %c18] : memref<1x3x326xf32, #tpu.memory_space<vmem>>, vector<1x3x288xf32>
    %18 = vector.shape_cast %17 : vector<1x3x288xf32> to vector<3x288xf32>
    %c3 = arith.constant 3 : index
    %c0_19 = arith.constant 0 : index
    %c0_20 = arith.constant 0 : index
    %19 = vector.load %arg2[%c3, %c0_19, %c0_20] : memref<9x32x3xf32, #tpu.memory_space<vmem>>, vector<1x32x3xf32>
    %20 = vector.shape_cast %19 : vector<1x32x3xf32> to vector<32x3xf32>
    %cst_21 = arith.constant dense<0.000000e+00> : vector<32x288xf32>
    %21 = tpu.matmul %20, %18, %cst_21 {dimension_numbers = #tpu.dot_dimension_numbers<[1], [0], [0], [1], [0, 0, 1, 1], [], []>} : vector<32x3xf32>, vector<3x288xf32>, vector<32x288xf32> -> vector<32x288xf32>
    %22 = arith.addf %16, %21 : vector<32x288xf32>
    %c0_22 = arith.constant 0 : index
    %c0_23 = arith.constant 0 : index
    %c19 = arith.constant 19 : index
    %23 = vector.load %arg1[%c0_22, %c0_23, %c19] : memref<1x3x326xf32, #tpu.memory_space<vmem>>, vector<1x3x288xf32>
    %24 = vector.shape_cast %23 : vector<1x3x288xf32> to vector<3x288xf32>
    %c4 = arith.constant 4 : index
    %c0_24 = arith.constant 0 : index
    %c0_25 = arith.constant 0 : index
    %25 = vector.load %arg2[%c4, %c0_24, %c0_25] : memref<9x32x3xf32, #tpu.memory_space<vmem>>, vector<1x32x3xf32>
    %26 = vector.shape_cast %25 : vector<1x32x3xf32> to vector<32x3xf32>
    %cst_26 = arith.constant dense<0.000000e+00> : vector<32x288xf32>
    %27 = tpu.matmul %26, %24, %cst_26 {dimension_numbers = #tpu.dot_dimension_numbers<[1], [0], [0], [1], [0, 0, 1, 1], [], []>} : vector<32x3xf32>, vector<3x288xf32>, vector<32x288xf32> -> vector<32x288xf32>
    %28 = arith.addf %22, %27 : vector<32x288xf32>
    %c0_27 = arith.constant 0 : index
    %c0_28 = arith.constant 0 : index
    %c20 = arith.constant 20 : index
    %29 = vector.load %arg1[%c0_27, %c0_28, %c20] : memref<1x3x326xf32, #tpu.memory_space<vmem>>, vector<1x3x288xf32>
    %30 = vector.shape_cast %29 : vector<1x3x288xf32> to vector<3x288xf32>
    %c5 = arith.constant 5 : index
    %c0_29 = arith.constant 0 : index
    %c0_30 = arith.constant 0 : index
    %31 = vector.load %arg2[%c5, %c0_29, %c0_30] : memref<9x32x3xf32, #tpu.memory_space<vmem>>, vector<1x32x3xf32>
    %32 = vector.shape_cast %31 : vector<1x32x3xf32> to vector<32x3xf32>
    %cst_31 = arith.constant dense<0.000000e+00> : vector<32x288xf32>
    %33 = tpu.matmul %32, %30, %cst_31 {dimension_numbers = #tpu.dot_dimension_numbers<[1], [0], [0], [1], [0, 0, 1, 1], [], []>} : vector<32x3xf32>, vector<3x288xf32>, vector<32x288xf32> -> vector<32x288xf32>
    %34 = arith.addf %28, %33 : vector<32x288xf32>
    %c0_32 = arith.constant 0 : index
    %c0_33 = arith.constant 0 : index
    %c36 = arith.constant 36 : index
    %35 = vector.load %arg1[%c0_32, %c0_33, %c36] : memref<1x3x326xf32, #tpu.memory_space<vmem>>, vector<1x3x288xf32>
    %36 = vector.shape_cast %35 : vector<1x3x288xf32> to vector<3x288xf32>
    %c6 = arith.constant 6 : index
    %c0_34 = arith.constant 0 : index
    %c0_35 = arith.constant 0 : index
    %37 = vector.load %arg2[%c6, %c0_34, %c0_35] : memref<9x32x3xf32, #tpu.memory_space<vmem>>, vector<1x32x3xf32>
    %38 = vector.shape_cast %37 : vector<1x32x3xf32> to vector<32x3xf32>
    %cst_36 = arith.constant dense<0.000000e+00> : vector<32x288xf32>
    %39 = tpu.matmul %38, %36, %cst_36 {dimension_numbers = #tpu.dot_dimension_numbers<[1], [0], [0], [1], [0, 0, 1, 1], [], []>} : vector<32x3xf32>, vector<3x288xf32>, vector<32x288xf32> -> vector<32x288xf32>
    %40 = arith.addf %34, %39 : vector<32x288xf32>
    %c0_37 = arith.constant 0 : index
    %c0_38 = arith.constant 0 : index
    %c37 = arith.constant 37 : index
    %41 = vector.load %arg1[%c0_37, %c0_38, %c37] : memref<1x3x326xf32, #tpu.memory_space<vmem>>, vector<1x3x288xf32>
    %42 = vector.shape_cast %41 : vector<1x3x288xf32> to vector<3x288xf32>
    %c7 = arith.constant 7 : index
    %c0_39 = arith.constant 0 : index
    %c0_40 = arith.constant 0 : index
    %43 = vector.load %arg2[%c7, %c0_39, %c0_40] : memref<9x32x3xf32, #tpu.memory_space<vmem>>, vector<1x32x3xf32>
    %44 = vector.shape_cast %43 : vector<1x32x3xf32> to vector<32x3xf32>
    %cst_41 = arith.constant dense<0.000000e+00> : vector<32x288xf32>
    %45 = tpu.matmul %44, %42, %cst_41 {dimension_numbers = #tpu.dot_dimension_numbers<[1], [0], [0], [1], [0, 0, 1, 1], [], []>} : vector<32x3xf32>, vector<3x288xf32>, vector<32x288xf32> -> vector<32x288xf32>
    %46 = arith.addf %40, %45 : vector<32x288xf32>
    %c0_42 = arith.constant 0 : index
    %c0_43 = arith.constant 0 : index
    %c38 = arith.constant 38 : index
    %47 = vector.load %arg1[%c0_42, %c0_43, %c38] : memref<1x3x326xf32, #tpu.memory_space<vmem>>, vector<1x3x288xf32>
    %48 = vector.shape_cast %47 : vector<1x3x288xf32> to vector<3x288xf32>
    %c8 = arith.constant 8 : index
    %c0_44 = arith.constant 0 : index
    %c0_45 = arith.constant 0 : index
    %49 = vector.load %arg2[%c8, %c0_44, %c0_45] : memref<9x32x3xf32, #tpu.memory_space<vmem>>, vector<1x32x3xf32>
    %50 = vector.shape_cast %49 : vector<1x32x3xf32> to vector<32x3xf32>
    %cst_46 = arith.constant dense<0.000000e+00> : vector<32x288xf32>
    %51 = tpu.matmul %50, %48, %cst_46 {dimension_numbers = #tpu.dot_dimension_numbers<[1], [0], [0], [1], [0, 0, 1, 1], [], []>} : vector<32x3xf32>, vector<3x288xf32>, vector<32x288xf32> -> vector<32x288xf32>
    %52 = arith.addf %46, %51 : vector<32x288xf32>
    %c0_47 = arith.constant 0 : index
    %c0_48 = arith.constant 0 : index
    %53 = vector.load %arg3[%c0_47, %c0_48] : memref<32x1xf32, #tpu.memory_space<vmem>>, vector<32x1xf32>
    %54 = vector.broadcast %53 : vector<32x1xf32> to vector<32x288xf32>
    %55 = arith.addf %52, %54 : vector<32x288xf32>
    %cst_49 = arith.constant 0.000000e+00 : f32
    %56 = vector.broadcast %cst_49 : f32 to vector<32x288xf32>
    %57 = arith.maximumf %55, %56 : vector<32x288xf32>
    %c0_50 = arith.constant 0 : index
    %c0_51 = arith.constant 0 : index
    %58 = vector.load %arg6[%c0_50, %c0_51] : memref<1x288xf32, #tpu.memory_space<vmem>>, vector<1x288xf32>
    %59 = vector.broadcast %58 : vector<1x288xf32> to vector<32x288xf32>
    %60 = arith.mulf %57, %59 : vector<32x288xf32>
    %cst_52 = arith.constant dense<0.000000e+00> : vector<32xf32>
    %61 = vector.multi_reduction <add>, %60, %cst_52 [1] : vector<32x288xf32> to vector<32xf32>
    %62 = vector.shape_cast %61 : vector<32xf32> to vector<32x1xf32>
    %c0_53 = arith.constant 0 : index
    %c0_54 = arith.constant 0 : index
    %63 = vector.load %arg4[%c0_53, %c0_54] : memref<10x32xf32, #tpu.memory_space<vmem>>, vector<10x32xf32>
    %cst_55 = arith.constant dense<0.000000e+00> : vector<10x1xf32>
    %64 = tpu.matmul %63, %62, %cst_55 {dimension_numbers = #tpu.dot_dimension_numbers<[1], [0], [0], [1], [0, 0, 1, 1], [], []>} : vector<10x32xf32>, vector<32x1xf32>, vector<10x1xf32> -> vector<10x1xf32>
    %c0_56 = arith.constant 0 : index
    %c0_57 = arith.constant 0 : index
    %65 = vector.load %arg5[%c0_56, %c0_57] : memref<10x1xf32, #tpu.memory_space<vmem>>, vector<10x1xf32>
    %66 = arith.addf %64, %65 : vector<10x1xf32>
    %c0_58 = arith.constant 0 : index
    %c0_59 = arith.constant 0 : index
    %c0_60 = arith.constant 0 : index
    %67 = vector.load %arg7[%c0_58, %c0_59, %c0_60] : memref<1x10x1xf32, #tpu.memory_space<vmem>>, vector<1x10x1xf32>
    %68 = vector.shape_cast %67 : vector<1x10x1xf32> to vector<10x1xf32>
    %69 = vector.shape_cast %66 : vector<10x1xf32> to vector<1x10x1xf32>
    tpu.vector_store %arg7[%c0_58, %c0_59, %c0_60], %69 {strides = array<i32>} : memref<1x10x1xf32, #tpu.memory_space<vmem>>, vector<1x10x1xf32>,
    return
  }
  func.func @transform_0(%arg0: i32) -> (i32, i32, i32) {
    %c0_i32 = arith.constant 0 : i32
    %c0_i32_0 = arith.constant 0 : i32
    %c0_i32_1 = arith.constant 0 : i32
    return %arg0, %c0_i32, %c0_i32_0 : i32, i32, i32
  }
  func.func @transform_1(%arg0: i32) -> (i32, i32, i32) {
    %c0_i32 = arith.constant 0 : i32
    %c0_i32_0 = arith.constant 0 : i32
    %c0_i32_1 = arith.constant 0 : i32
    %c0_i32_2 = arith.constant 0 : i32
    return %c0_i32, %c0_i32_0, %c0_i32_1 : i32, i32, i32
  }
  func.func @transform_2(%arg0: i32) -> (i32, i32) {
    %c0_i32 = arith.constant 0 : i32
    %c0_i32_0 = arith.constant 0 : i32
    %c0_i32_1 = arith.constant 0 : i32
    return %c0_i32, %c0_i32_0 : i32, i32
  }
  func.func @transform_3(%arg0: i32) -> (i32, i32) {
    %c0_i32 = arith.constant 0 : i32
    %c0_i32_0 = arith.constant 0 : i32
    %c0_i32_1 = arith.constant 0 : i32
    return %c0_i32, %c0_i32_0 : i32, i32
  }
  func.func @transform_4(%arg0: i32) -> (i32, i32) {
    %c0_i32 = arith.constant 0 : i32
    %c0_i32_0 = arith.constant 0 : i32
    %c0_i32_1 = arith.constant 0 : i32
    return %c0_i32, %c0_i32_0 : i32, i32
  }
  func.func @transform_5(%arg0: i32) -> (i32, i32) {
    %c0_i32 = arith.constant 0 : i32
    %c0_i32_0 = arith.constant 0 : i32
    %c0_i32_1 = arith.constant 0 : i32
    return %c0_i32, %c0_i32_0 : i32, i32
  }
  func.func @transform_6(%arg0: i32) -> (i32, i32, i32) {
    %c0_i32 = arith.constant 0 : i32
    %c0_i32_0 = arith.constant 0 : i32
    %c0_i32_1 = arith.constant 0 : i32
    return %arg0, %c0_i32, %c0_i32_0 : i32, i32, i32
  }
}

</mosaic_0001>

<llo_original>
// kernel: network_forward.1
$region0: #{network_forward.1}
  #allocation0 [shape = 'u32[]', space=smem, size = 0x4, offset = 0x4, fixed_abs, tag = 'smem constant byte address 0x4 - core index']
  #allocation1 [shape = 'u32[144,128]{1,0:T(1,128)}', space=vmem, size = 0x12000, scoped, tag = 'internal scratch']
  %s0 = inlined_call_operand.vmem [shape: f32[2,3,326], index: 0, kind: input, shape index: {}]
  %s1 = inlined_call_operand.vmem [shape: f32[9,32,3], index: 1, kind: input, shape index: {}]
  %s2 = inlined_call_operand.vmem [shape: f32[32,1], index: 2, kind: input, shape index: {}]
  %s3 = inlined_call_operand.vmem [shape: f32[10,32], index: 3, kind: input, shape index: {}]
  %s4 = inlined_call_operand.vmem [shape: f32[10,1], index: 4, kind: input, shape index: {}]
  %s5 = inlined_call_operand.vmem [shape: f32[1,288], index: 5, kind: input, shape index: {}]
  %s6 = inlined_call_operand.vmem [shape: f32[2,10,1], index: 6, kind: output, shape index: {}]
  %s7 = sld [smem:[#allocation0]]
  $region57: #{network_forward.1} parent=0
    _
  %s9 = ssub.s32 1, %s7
  %s10 = scalar_select 0, %s9, %s7
  loop: start=0, step=1, limit=4
  $region2: #{network_forward.1} parent=0 // loop_pre_header
    _
  $region3: #{network_forward.1} parent=0 // loop_header
    %s12 = sphi 0, %s16
    %p13 = scmp.ge.s32.totalorder %s12, 4
    %s22 = sphi 0, %s24
    %s25 = sphi 0, %s22
    %s26 = sphi 0, %s25
    %s42 = sphi 0, %s26
    %s46 = sphi 0, %s46
    %s48 = sphi 0, %s46
    %s49 = sphi 0, %s48
    %s63 = sphi 0, %s49
    %s67 = sphi 0, %s67
    %s69 = sphi 0, %s67
    %s70 = sphi 0, %s69
    %s84 = sphi 0, %s70
    %s88 = sphi 0, %s88
    %s90 = sphi 0, %s88
    %s91 = sphi 0, %s90
    %s105 = sphi 0, %s91
    %s109 = sphi 0, %s109
    %s111 = sphi 0, %s109
    %s112 = sphi 0, %s111
    %s126 = sphi 0, %s112
    %s130 = sphi 0, %s130
    %s132 = sphi 0, %s130
    %s133 = sphi 0, %s132
    %s147 = sphi 0, %s133
    %s153 = sphi 0, %s155
    %s156 = sphi 0, %s153
    %s157 = sphi 0, %s156
    %s173 = sphi 0, %s157
  $region4: #{network_forward.1} parent=0 // loop_header_branch
    %15 = sbr.rel (%p13) target = $region8
  $region5: #{network_forward.1} parent=0 // loop_body
    %s17 = ssub.s32 %s12, 1
    %s18 = ssub.s32 %s12, 2
    %s19 = sadd.s32 %s12, 1
    %s20 = ssub.s32 %s12, %s19
    %p21 = scmp.eq.s32.totalorder %s20, 0
    %s23 = sadd.s32 %s22, 1
    %s24 = scalar_select %p21, %s22, %s23
    %p27 = pneg %p21
    %p28 = scmp.eq.s32.totalorder %s12, 1
    %p29 = por %p27, %p28
    %p30 = scmp.ne.s32.totalorder %s22, %s25
    %p31 = scmp.eq.s32.totalorder %s12, 0
    %p32 = por %p30, %p31
    %p33 = scmp.ne.s32.totalorder %s22, %s25
    %p34 = scmp.eq.s32.totalorder %s17, 1
    %p35 = por %p33, %p34
    %p36 = scmp.ne.s32.totalorder %s25, %s26
    %p37 = scmp.eq.s32.totalorder %s17, 0
    %p38 = por %p36, %p37
    %p39 = scmp.ne.s32.totalorder %s25, %s26
    %p40 = scmp.eq.s32.totalorder %s18, 1
    %p41 = por %p39, %p40
    %p43 = scmp.ne.s32.totalorder %s26, %s42
    %p44 = scmp.eq.s32.totalorder %s18, 0
    %p45 = por %p43, %p44
    %s47 = sadd.s32 %s46, 1
    %p50 = scmp.eq.s32.totalorder %s12, 1
    %p51 = scmp.ne.s32.totalorder %s46, %s48
    %p52 = scmp.eq.s32.totalorder %s12, 0
    %p53 = por %p51, %p52
    %p54 = scmp.ne.s32.totalorder %s46, %s48
    %p55 = scmp.eq.s32.totalorder %s17, 1
    %p56 = por %p54, %p55
    %p57 = scmp.ne.s32.totalorder %s48, %s49
    %p58 = scmp.eq.s32.totalorder %s17, 0
    %p59 = por %p57, %p58
    %p60 = scmp.ne.s32.totalorder %s48, %s49
    %p61 = scmp.eq.s32.totalorder %s18, 1
    %p62 = por %p60, %p61
    %p64 = scmp.ne.s32.totalorder %s49, %s63
    %p65 = scmp.eq.s32.totalorder %s18, 0
    %p66 = por %p64, %p65
    %s68 = sadd.s32 %s67, 1
    %p71 = scmp.eq.s32.totalorder %s12, 1
    %p72 = scmp.ne.s32.totalorder %s67, %s69
    %p73 = scmp.eq.s32.totalorder %s12, 0
    %p74 = por %p72, %p73
    %p75 = scmp.ne.s32.totalorder %s67, %s69
    %p76 = scmp.eq.s32.totalorder %s17, 1
    %p77 = por %p75, %p76
    %p78 = scmp.ne.s32.totalorder %s69, %s70
    %p79 = scmp.eq.s32.totalorder %s17, 0
    %p80 = por %p78, %p79
    %p81 = scmp.ne.s32.totalorder %s69, %s70
    %p82 = scmp.eq.s32.totalorder %s18, 1
    %p83 = por %p81, %p82
    %p85 = scmp.ne.s32.totalorder %s70, %s84
    %p86 = scmp.eq.s32.totalorder %s18, 0
    %p87 = por %p85, %p86
    %s89 = sadd.s32 %s88, 1
    %p92 = scmp.eq.s32.totalorder %s12, 1
    %p93 = scmp.ne.s32.totalorder %s88, %s90
    %p94 = scmp.eq.s32.totalorder %s12, 0
    %p95 = por %p93, %p94
    %p96 = scmp.ne.s32.totalorder %s88, %s90
    %p97 = scmp.eq.s32.totalorder %s17, 1
    %p98 = por %p96, %p97
    %p99 = scmp.ne.s32.totalorder %s90, %s91
    %p100 = scmp.eq.s32.totalorder %s17, 0
    %p101 = por %p99, %p100
    %p102 = scmp.ne.s32.totalorder %s90, %s91
    %p103 = scmp.eq.s32.totalorder %s18, 1
    %p104 = por %p102, %p103
    %p106 = scmp.ne.s32.totalorder %s91, %s105
    %p107 = scmp.eq.s32.totalorder %s18, 0
    %p108 = por %p106, %p107
    %s110 = sadd.s32 %s109, 1
    %p113 = scmp.eq.s32.totalorder %s12, 1
    %p114 = scmp.ne.s32.totalorder %s109, %s111
    %p115 = scmp.eq.s32.totalorder %s12, 0
    %p116 = por %p114, %p115
    %p117 = scmp.ne.s32.totalorder %s109, %s111
    %p118 = scmp.eq.s32.totalorder %s17, 1
    %p119 = por %p117, %p118
    %p120 = scmp.ne.s32.totalorder %s111, %s112
    %p121 = scmp.eq.s32.totalorder %s17, 0
    %p122 = por %p120, %p121
    %p123 = scmp.ne.s32.totalorder %s111, %s112
    %p124 = scmp.eq.s32.totalorder %s18, 1
    %p125 = por %p123, %p124
    %p127 = scmp.ne.s32.totalorder %s112, %s126
    %p128 = scmp.eq.s32.totalorder %s18, 0
    %p129 = por %p127, %p128
    %s131 = sadd.s32 %s130, 1
    %p134 = scmp.eq.s32.totalorder %s12, 1
    %p135 = scmp.ne.s32.totalorder %s130, %s132
    %p136 = scmp.eq.s32.totalorder %s12, 0
    %p137 = por %p135, %p136
    %p138 = scmp.ne.s32.totalorder %s130, %s132
    %p139 = scmp.eq.s32.totalorder %s17, 1
    %p140 = por %p138, %p139
    %p141 = scmp.ne.s32.totalorder %s132, %s133
    %p142 = scmp.eq.s32.totalorder %s17, 0
    %p143 = por %p141, %p142
    %p144 = scmp.ne.s32.totalorder %s132, %s133
    %p145 = scmp.eq.s32.totalorder %s18, 1
    %p146 = por %p144, %p145
    %p148 = scmp.ne.s32.totalorder %s133, %s147
    %p149 = scmp.eq.s32.totalorder %s18, 0
    %p150 = por %p148, %p149
    %s151 = ssub.s32 %s12, %s19
    %p152 = scmp.eq.s32.totalorder %s151, 0
    %s154 = sadd.s32 %s153, 1
    %s155 = scalar_select %p152, %s153, %s154
    %p158 = pneg %p152
    %p159 = scmp.eq.s32.totalorder %s12, 1
    %p160 = por %p158, %p159
    %p161 = scmp.ne.s32.totalorder %s153, %s156
    %p162 = scmp.eq.s32.totalorder %s12, 0
    %p163 = por %p161, %p162
    %p164 = scmp.ne.s32.totalorder %s153, %s156
    %p165 = scmp.eq.s32.totalorder %s17, 1
    %p166 = por %p164, %p165
    %p167 = scmp.ne.s32.totalorder %s156, %s157
    %p168 = scmp.eq.s32.totalorder %s17, 0
    %p169 = por %p167, %p168
    %p170 = scmp.ne.s32.totalorder %s156, %s157
    %p171 = scmp.eq.s32.totalorder %s18, 1
    %p172 = por %p170, %p171
    %p174 = scmp.ne.s32.totalorder %s157, %s173
    %p175 = scmp.eq.s32.totalorder %s18, 0
    %p176 = por %p174, %p175
    %p177 = scmp.le.s32.totalorder 1, %s12
    %p178 = scmp.lt.s32.totalorder %s12, 3
    %p179 = pnand %p177, %p178
    %p180 = pneg %p179
    // Predicated region
    $region9: #{network_forward.1} parent=5 // pred_check
      _
    $region10: #{network_forward.1} parent=5 // pred_check_branch
      %182 = sbr.rel (%p179) target = $region12
    $region11: #{network_forward.1} parent=5 // pred_region
      %s183 = ssub.s32 %s12, 1
      // Predicated region
      $region13: #{network_forward.1} parent=11 // pred_check
        %p184 = pneg %p59
      $region14: #{network_forward.1} parent=11 // pred_check_branch
        %186 = sbr.rel (%p184) target = $region16
      $region15: #{network_forward.1} parent=11 // pred_region
        _
      $region16: #{network_forward.1} parent=11 // pred_fallthru
        _
      // Predicated region
      $region17: #{network_forward.1} parent=11 // pred_check
        %p187 = pneg %p80
      $region18: #{network_forward.1} parent=11 // pred_check_branch
        %189 = sbr.rel (%p187) target = $region20
      $region19: #{network_forward.1} parent=11 // pred_region
        _
      $region20: #{network_forward.1} parent=11 // pred_fallthru
        _
      // Predicated region
      $region21: #{network_forward.1} parent=11 // pred_check
        %p190 = pneg %p101
      $region22: #{network_forward.1} parent=11 // pred_check_branch
        %192 = sbr.rel (%p190) target = $region24
      $region23: #{network_forward.1} parent=11 // pred_region
        _
      $region24: #{network_forward.1} parent=11 // pred_fallthru
        _
      // Predicated region
      $region25: #{network_forward.1} parent=11 // pred_check
        %p193 = pneg %p122
      $region26: #{network_forward.1} parent=11 // pred_check_branch
        %195 = sbr.rel (%p193) target = $region28
      $region27: #{network_forward.1} parent=11 // pred_region
        _
      $region28: #{network_forward.1} parent=11 // pred_fallthru
        _
      // Predicated region
      $region29: #{network_forward.1} parent=11 // pred_check
        %p196 = pneg %p143
      $region30: #{network_forward.1} parent=11 // pred_check_branch
        %198 = sbr.rel (%p196) target = $region32
      $region31: #{network_forward.1} parent=11 // pred_region
        _
      $region32: #{network_forward.1} parent=11 // pred_fallthru
        _
    $region12: #{network_forward.1} parent=5 // pred_fallthru
      _
    %p199 = scmp.lt.s32.totalorder %s12, 2
    // Predicated region
    $region33: #{network_forward.1} parent=5 // pred_check
      %p200 = pneg %p199
    $region34: #{network_forward.1} parent=5 // pred_check_branch
      %202 = sbr.rel (%p200) target = $region36
    $region35: #{network_forward.1} parent=5 // pred_region
      // Predicated region
      $region37: #{network_forward.1} parent=35 // pred_check
        %p203 = pneg %p32
      $region38: #{network_forward.1} parent=35 // pred_check_branch
        %205 = sbr.rel (%p203) target = $region40
      $region39: #{network_forward.1} parent=35 // pred_region
        %p206 = scmp.lt.s32.totalorder %s12, 1
        %s207 = scalar_select %p206, %s12, 1
        %s208 = smul.addr %s207, 3
        %s209 = smul.addr %s208, 4
        %s210 = scalar_lea.vmem %s0, %s209
      $region40: #{network_forward.1} parent=35 // pred_fallthru
        _
    $region36: #{network_forward.1} parent=5 // pred_fallthru
      _
    %p211 = scmp.le.s32.totalorder 1, %s12
    %p212 = scmp.lt.s32.totalorder %s12, 3
    %p213 = pnand %p211, %p212
    %p214 = pneg %p213
    // Predicated region
    $region41: #{network_forward.1} parent=5 // pred_check
      _
    $region42: #{network_forward.1} parent=5 // pred_check_branch
      %216 = sbr.rel (%p213) target = $region44
    $region43: #{network_forward.1} parent=5 // pred_region
      %s217 = ssub.s32 %s12, 1
      %p218 = scmp.lt.s32.totalorder %s17, 1
      %s219 = scalar_select %p218, %s17, 1
      %s220 = smul.addr %s219, 3
      %s221 = smul.addr %s220, 4
      %s222 = scalar_lea.vmem %s0, %s221
      %p223 = pneg %p38
      %p224 = pneg %p35
      %p225 = pneg %p59
      %p226 = pneg %p56
      %p227 = pneg %p80
      %p228 = pneg %p77
      %p229 = pneg %p101
      %p230 = pneg %p98
      %p231 = pneg %p122
      %p232 = pneg %p119
      %p233 = pneg %p143
      %p234 = pneg %p140
      %p235 = pneg %p169
      %p236 = pneg %p166
      %p237 = scmp.lt.s32.totalorder %s17, 1
      %s238 = scalar_select %p237, %s17, 1
      %s239 = smul.addr %s238, 2
      %s240 = smul.addr %s239, 8
      %s241 = scalar_lea.vmem %s6, %s240
      %p242 = scmp.lt.s32.totalorder %s17, 1
      %s243 = scalar_select %p242, %s17, 1
      %s244 = smul.addr %s243, 3
      %s245 = smul.addr %s244, 4
      %s246 = scalar_lea.vmem %s0, %s245
      %p247 = scmp.lt.s32.totalorder %s17, 1
      %s248 = scalar_select %p247, %s17, 1
      %s249 = smul.addr %s248, 2
      %s250 = smul.addr %s249, 8
      %s251 = scalar_lea.vmem %s6, %s250
      %v252 = vld [vmem:[%s246] sm:$0x77]
      %v253 = vld [vmem:[%s246 + $0x8] sm:$0x7]
      %v254 = vld [vmem:[%s1] sm:$0xff]
      %v255 = vld [vmem:[%s1 + $0x8] sm:$0xff]
      %v256 = vld [vmem:[%s1 + $0x10] sm:$0xff]
      %v257 = vld [vmem:[%s1 + $0x18] sm:$0xff]
      %s258 = scalar_lea.vmem %s1, 32
      %v259 = vld [vmem:[%s258] sm:$0xff]
      %v260 = vld [vmem:[%s258 + $0x8] sm:$0xff]
      %v261 = vld [vmem:[%s258 + $0x10] sm:$0xff]
      %v262 = vld [vmem:[%s258 + $0x18] sm:$0xff]
      %v265 = vcombine.high %v252, %v252
      %266 = vrot.lane.b32.xlu0 %v252, 127
      %v267 = vpop.permute.xlu0 %266
      %268 = vrot.lane.b32.xlu0 %v265, 127
      %v269 = vpop.permute.xlu0 %268
      %270 = vrot.lane.b32.xlu0 %v253, 127
      %v271 = vpop.permute.xlu0 %270
      %vm272 = vcmask 1039360
      %v273 = vsel %vm272, %v267, %v269
      %v274 = vsel %vm272, %v269, %v271
      %vm275 = vcmask 23552
      %v277 = vsel %vm275, %v259, 0
      %v280 = vsel %vm275, %v260, 0
      %v283 = vsel %vm275, %v261, 0
      %v286 = vsel %vm275, %v262, 0
      %vm288 = vcmask 1042432
      %v289 = vsel %vm288, %v273, 0
      %v291 = vsel %vm288, %v274, 0
      %v293 = vsel %vm288, %v271, 0
      %295 = vmatprep.subr.mxu0 %v291
      %296 = vmatpush1.msra.mxu0 %v289
      %297 = vmatprep.subr.mxu0 0.0
      %298 = vmatpush1.msra.mxu0 0.0
      %299 = vmatprep.subr.mxu0 0.0
      %300 = vmatpush1.msra.mxu0 0.0
      %301 = vmatprep.subr.mxu0 0.0
      %302 = vmatpush1.msra.mxu0 0.0
      %303 = vmatprep.subr.mxu0 0.0
      %304 = vmatpush1.msra.mxu0 0.0
      %305 = vmatprep.subr.mxu0 0.0
      %306 = vmatpush1.msra.mxu0 0.0
      %307 = vmatprep.subr.mxu0 0.0
      %308 = vmatpush1.msra.mxu0 0.0
      %309 = vmatprep.subr.mxu0 0.0
      %310 = vmatpush1.msra.mxu0 0.0
      %311 = vmatprep.subr.mxu0 0.0
      %312 = vmatpush1.msra.mxu0 0.0
      %313 = vmatprep.subr.mxu0 0.0
      %314 = vmatpush1.msra.mxu0 0.0
      %315 = vmatprep.subr.mxu0 0.0
      %316 = vmatpush1.msra.mxu0 0.0
      %317 = vmatprep.subr.mxu0 0.0
      %318 = vmatpush1.msra.mxu0 0.0
      %319 = vmatprep.subr.mxu0 0.0
      %320 = vmatpush1.msra.mxu0 0.0
      %321 = vmatprep.subr.mxu0 0.0
      %322 = vmatpush1.msra.mxu0 0.0
      %323 = vmatprep.subr.mxu0 0.0
      %324 = vmatpush1.msra.mxu0 0.0
      %325 = vmatprep.subr.mxu0 0.0
      %326 = vmatpush1.msra.mxu0 0.0
      %327 = vmatprep.subr.mxu0 0.0
      %328 = vmatpush1.msra.mxu0 0.0
      %329 = vmatprep.subr.mxu0 0.0
      %330 = vmatpush1.msra.mxu0 0.0
      %331 = vmatprep.subr.mxu0 0.0
      %332 = vmatpush1.msra.mxu0 0.0
      %333 = vmatprep.subr.mxu0 0.0
      %334 = vmatpush1.msra.mxu0 0.0
      %335 = vmatprep.subr.mxu0 0.0
      %336 = vmatpush1.msra.mxu0 0.0
      %337 = vmatprep.subr.mxu0 0.0
      %338 = vmatpush1.msra.mxu0 0.0
      %339 = vmatprep.subr.mxu0 0.0
      %340 = vmatpush1.msra.mxu0 0.0
      %341 = vmatprep.subr.mxu0 0.0
      %342 = vmatpush1.msra.mxu0 0.0
      %343 = vmatprep.subr.mxu0 0.0
      %344 = vmatpush1.msra.mxu0 0.0
      %345 = vmatprep.subr.mxu0 0.0
      %346 = vmatpush1.msra.mxu0 0.0
      %347 = vmatprep.subr.mxu0 0.0
      %348 = vmatpush1.msra.mxu0 0.0
      %349 = vmatprep.subr.mxu0 0.0
      %350 = vmatpush1.msra.mxu0 0.0
      %351 = vmatprep.subr.mxu0 0.0
      %352 = vmatpush1.msra.mxu0 0.0
      %353 = vmatprep.subr.mxu0 0.0
      %354 = vmatpush1.msra.mxu0 0.0
      %355 = vmatprep.subr.mxu0 0.0
      %356 = vmatpush1.msra.mxu0 0.0
      %357 = vmatprep.subr.mxu0 0.0
      %358 = vmatpush1.msra.mxu0 0.0
      %359 = vmatprep.mubr.f32.mxu0 0.0
      %360 = vmatmul.mubr.f32.gmra.mrb[0].mxu0 %v277
      %v361 = vpop.f32.mrb[0].mxu0
      %v362 = vadd.f32 0.0, %v361
      %v363 = vpop.f32.mrb[0].mxu0
      %v364 = vadd.f32 0.0, %v363
      %365 = vmatprep.mubr.f32.mxu0 0.0
      %366 = vmatmul.mubr.f32.gmra.mrb[0].mxu0 %v280
      %v367 = vpop.f32.mrb[0].mxu0
      %v368 = vadd.f32 0.0, %v367
      %v369 = vpop.f32.mrb[0].mxu0
      %v370 = vadd.f32 0.0, %v369
      %371 = vmatprep.mubr.f32.mxu0 0.0
      %372 = vmatmul.mubr.f32.gmra.mrb[0].mxu0 %v283
      %v373 = vpop.f32.mrb[0].mxu0
      %v374 = vadd.f32 0.0, %v373
      %v375 = vpop.f32.mrb[0].mxu0
      %v376 = vadd.f32 0.0, %v375
      %377 = vmatprep.mubr.f32.mxu0 0.0
      %378 = vmatmul.mubr.f32.gmra.mrb[0].mxu0 %v286
      %v379 = vpop.f32.mrb[0].mxu0
      %v380 = vadd.f32 0.0, %v379
      %v381 = vpop.f32.mrb[0].mxu0
      %v382 = vadd.f32 0.0, %v381
      %383 = vdwg.mxu0
      %384 = vmatprep.subr.mxu0 0.0
      %385 = vmatpush1.msra.mxu0 %v293
      %386 = vmatprep.subr.mxu0 0.0
      %387 = vmatpush1.msra.mxu0 0.0
      %388 = vmatprep.subr.mxu0 0.0
      %389 = vmatpush1.msra.mxu0 0.0
      %390 = vmatprep.subr.mxu0 0.0
      %391 = vmatpush1.msra.mxu0 0.0
      %392 = vmatprep.subr.mxu0 0.0
      %393 = vmatpush1.msra.mxu0 0.0
      %394 = vmatprep.subr.mxu0 0.0
      %395 = vmatpush1.msra.mxu0 0.0
      %396 = vmatprep.subr.mxu0 0.0
      %397 = vmatpush1.msra.mxu0 0.0
      %398 = vmatprep.subr.mxu0 0.0
      %399 = vmatpush1.msra.mxu0 0.0
      %400 = vmatprep.subr.mxu0 0.0
      %401 = vmatpush1.msra.mxu0 0.0
      %402 = vmatprep.subr.mxu0 0.0
      %403 = vmatpush1.msra.mxu0 0.0
      %404 = vmatprep.subr.mxu0 0.0
      %405 = vmatpush1.msra.mxu0 0.0
      %406 = vmatprep.subr.mxu0 0.0
      %407 = vmatpush1.msra.mxu0 0.0
      %408 = vmatprep.subr.mxu0 0.0
      %409 = vmatpush1.msra.mxu0 0.0
      %410 = vmatprep.subr.mxu0 0.0
      %411 = vmatpush1.msra.mxu0 0.0
      %412 = vmatprep.subr.mxu0 0.0
      %413 = vmatpush1.msra.mxu0 0.0
      %414 = vmatprep.subr.mxu0 0.0
      %415 = vmatpush1.msra.mxu0 0.0
      %416 = vmatprep.subr.mxu0 0.0
      %417 = vmatpush1.msra.mxu0 0.0
      %418 = vmatprep.subr.mxu0 0.0
      %419 = vmatpush1.msra.mxu0 0.0
      %420 = vmatprep.subr.mxu0 0.0
      %421 = vmatpush1.msra.mxu0 0.0
      %422 = vmatprep.subr.mxu0 0.0
      %423 = vmatpush1.msra.mxu0 0.0
      %424 = vmatprep.subr.mxu0 0.0
      %425 = vmatpush1.msra.mxu0 0.0
      %426 = vmatprep.subr.mxu0 0.0
      %427 = vmatpush1.msra.mxu0 0.0
      %428 = vmatprep.subr.mxu0 0.0
      %429 = vmatpush1.msra.mxu0 0.0
      %430 = vmatprep.subr.mxu0 0.0
      %431 = vmatpush1.msra.mxu0 0.0
      %432 = vmatprep.subr.mxu0 0.0
      %433 = vmatpush1.msra.mxu0 0.0
      %434 = vmatprep.subr.mxu0 0.0
      %435 = vmatpush1.msra.mxu0 0.0
      %436 = vmatprep.subr.mxu0 0.0
      %437 = vmatpush1.msra.mxu0 0.0
      %438 = vmatprep.subr.mxu0 0.0
      %439 = vmatpush1.msra.mxu0 0.0
      %440 = vmatprep.subr.mxu0 0.0
      %441 = vmatpush1.msra.mxu0 0.0
      %442 = vmatprep.subr.mxu0 0.0
      %443 = vmatpush1.msra.mxu0 0.0
      %444 = vmatprep.subr.mxu0 0.0
      %445 = vmatpush1.msra.mxu0 0.0
      %446 = vmatprep.subr.mxu0 0.0
      %447 = vmatpush1.msra.mxu0 0.0
      %448 = vmatprep.mubr.f32.mxu0 0.0
      %449 = vmatmul.mubr.f32.gmra.mrb[0].mxu0 %v277
      %v450 = vpop.f32.mrb[0].mxu0
      %v451 = vadd.f32 0.0, %v450
      %v452 = vpop.f32.mrb[0].mxu0
      %453 = vmatprep.mubr.f32.mxu0 0.0
      %454 = vmatmul.mubr.f32.gmra.mrb[0].mxu0 %v280
      %v455 = vpop.f32.mrb[0].mxu0
      %v456 = vadd.f32 0.0, %v455
      %v457 = vpop.f32.mrb[0].mxu0
      %458 = vmatprep.mubr.f32.mxu0 0.0
      %459 = vmatmul.mubr.f32.gmra.mrb[0].mxu0 %v283
      %v460 = vpop.f32.mrb[0].mxu0
      %v461 = vadd.f32 0.0, %v460
      %v462 = vpop.f32.mrb[0].mxu0
      %463 = vmatprep.mubr.f32.mxu0 0.0
      %464 = vmatmul.mubr.f32.gmra.mrb[0].mxu0 %v286
      %v465 = vpop.f32.mrb[0].mxu0
      %v466 = vadd.f32 0.0, %v465
      %v467 = vpop.f32.mrb[0].mxu0
      %468 = vdwg.mxu0
      %v470 = vsel %vm275, %v254, 0
      %v473 = vsel %vm275, %v255, 0
      %v476 = vsel %vm275, %v256, 0
      %v479 = vsel %vm275, %v257, 0
      %v481 = vsel %vm288, %v252, 0
      %v483 = vsel %vm288, %v265, 0
      %v485 = vsel %vm288, %v253, 0
      %487 = vmatprep.subr.mxu0 %v483
      %488 = vmatpush1.msra.mxu0 %v481
      %489 = vmatprep.subr.mxu0 0.0
      %490 = vmatpush1.msra.mxu0 0.0
      %491 = vmatprep.subr.mxu0 0.0
      %492 = vmatpush1.msra.mxu0 0.0
      %493 = vmatprep.subr.mxu0 0.0
      %494 = vmatpush1.msra.mxu0 0.0
      %495 = vmatprep.subr.mxu0 0.0
      %496 = vmatpush1.msra.mxu0 0.0
      %497 = vmatprep.subr.mxu0 0.0
      %498 = vmatpush1.msra.mxu0 0.0
      %499 = vmatprep.subr.mxu0 0.0
      %500 = vmatpush1.msra.mxu0 0.0
      %501 = vmatprep.subr.mxu0 0.0
      %502 = vmatpush1.msra.mxu0 0.0
      %503 = vmatprep.subr.mxu0 0.0
      %504 = vmatpush1.msra.mxu0 0.0
      %505 = vmatprep.subr.mxu0 0.0
      %506 = vmatpush1.msra.mxu0 0.0
      %507 = vmatprep.subr.mxu0 0.0
      %508 = vmatpush1.msra.mxu0 0.0
      %509 = vmatprep.subr.mxu0 0.0
      %510 = vmatpush1.msra.mxu0 0.0
      %511 = vmatprep.subr.mxu0 0.0
      %512 = vmatpush1.msra.mxu0 0.0
      %513 = vmatprep.subr.mxu0 0.0
      %514 = vmatpush1.msra.mxu0 0.0
      %515 = vmatprep.subr.mxu0 0.0
      %516 = vmatpush1.msra.mxu0 0.0
      %517 = vmatprep.subr.mxu0 0.0
      %518 = vmatpush1.msra.mxu0 0.0
      %519 = vmatprep.subr.mxu0 0.0
      %520 = vmatpush1.msra.mxu0 0.0
      %521 = vmatprep.subr.mxu0 0.0
      %522 = vmatpush1.msra.mxu0 0.0
      %523 = vmatprep.subr.mxu0 0.0
      %524 = vmatpush1.msra.mxu0 0.0
      %525 = vmatprep.subr.mxu0 0.0
      %526 = vmatpush1.msra.mxu0 0.0
      %527 = vmatprep.subr.mxu0 0.0
      %528 = vmatpush1.msra.mxu0 0.0
      %529 = vmatprep.subr.mxu0 0.0
      %530 = vmatpush1.msra.mxu0 0.0
      %531 = vmatprep.subr.mxu0 0.0
      %532 = vmatpush1.msra.mxu0 0.0
      %533 = vmatprep.subr.mxu0 0.0
      %534 = vmatpush1.msra.mxu0 0.0
      %535 = vmatprep.subr.mxu0 0.0
      %536 = vmatpush1.msra.mxu0 0.0
      %537 = vmatprep.subr.mxu0 0.0
      %538 = vmatpush1.msra.mxu0 0.0
      %539 = vmatprep.subr.mxu0 0.0
      %540 = vmatpush1.msra.mxu0 0.0
      %541 = vmatprep.subr.mxu0 0.0
      %542 = vmatpush1.msra.mxu0 0.0
      %543 = vmatprep.subr.mxu0 0.0
      %544 = vmatpush1.msra.mxu0 0.0
      %545 = vmatprep.subr.mxu0 0.0
      %546 = vmatpush1.msra.mxu0 0.0
      %547 = vmatprep.subr.mxu0 0.0
      %548 = vmatpush1.msra.mxu0 0.0
      %549 = vmatprep.subr.mxu0 0.0
      %550 = vmatpush1.msra.mxu0 0.0
      %551 = vmatprep.mubr.f32.mxu0 0.0
      %552 = vmatmul.mubr.f32.gmra.mrb[0].mxu0 %v470
      %v553 = vpop.f32.mrb[0].mxu0
      %v554 = vadd.f32 %v362, %v553
      %v555 = vpop.f32.mrb[0].mxu0
      %v556 = vadd.f32 %v364, %v555
      %557 = vmatprep.mubr.f32.mxu0 0.0
      %558 = vmatmul.mubr.f32.gmra.mrb[0].mxu0 %v473
      %v559 = vpop.f32.mrb[0].mxu0
      %v560 = vadd.f32 %v368, %v559
      %v561 = vpop.f32.mrb[0].mxu0
      %v562 = vadd.f32 %v370, %v561
      %563 = vmatprep.mubr.f32.mxu0 0.0
      %564 = vmatmul.mubr.f32.gmra.mrb[0].mxu0 %v476
      %v565 = vpop.f32.mrb[0].mxu0
      %v566 = vadd.f32 %v374, %v565
      %v567 = vpop.f32.mrb[0].mxu0
      %v568 = vadd.f32 %v376, %v567
      %569 = vmatprep.mubr.f32.mxu0 0.0
      %570 = vmatmul.mubr.f32.gmra.mrb[0].mxu0 %v479
      %v571 = vpop.f32.mrb[0].mxu0
      %v572 = vadd.f32 %v380, %v571
      %v573 = vpop.f32.mrb[0].mxu0
      %v574 = vadd.f32 %v382, %v573
      %575 = vdwg.mxu0
      %576 = vmatprep.subr.mxu0 0.0
      %577 = vmatpush1.msra.mxu0 %v485
      %578 = vmatprep.subr.mxu0 0.0
      %579 = vmatpush1.msra.mxu0 0.0
      %580 = vmatprep.subr.mxu0 0.0
      %581 = vmatpush1.msra.mxu0 0.0
      %582 = vmatprep.subr.mxu0 0.0
      %583 = vmatpush1.msra.mxu0 0.0
      %584 = vmatprep.subr.mxu0 0.0
      %585 = vmatpush1.msra.mxu0 0.0
      %586 = vmatprep.subr.mxu0 0.0
      %587 = vmatpush1.msra.mxu0 0.0
      %588 = vmatprep.subr.mxu0 0.0
      %589 = vmatpush1.msra.mxu0 0.0
      %590 = vmatprep.subr.mxu0 0.0
      %591 = vmatpush1.msra.mxu0 0.0
      %592 = vmatprep.subr.mxu0 0.0
      %593 = vmatpush1.msra.mxu0 0.0
      %594 = vmatprep.subr.mxu0 0.0
      %595 = vmatpush1.msra.mxu0 0.0
      %596 = vmatprep.subr.mxu0 0.0
      %597 = vmatpush1.msra.mxu0 0.0
      %598 = vmatprep.subr.mxu0 0.0
      %599 = vmatpush1.msra.mxu0 0.0
      %600 = vmatprep.subr.mxu0 0.0
      %601 = vmatpush1.msra.mxu0 0.0
      %602 = vmatprep.subr.mxu0 0.0
      %603 = vmatpush1.msra.mxu0 0.0
      %604 = vmatprep.subr.mxu0 0.0
      %605 = vmatpush1.msra.mxu0 0.0
      %606 = vmatprep.subr.mxu0 0.0
      %607 = vmatpush1.msra.mxu0 0.0
      %608 = vmatprep.subr.mxu0 0.0
      %609 = vmatpush1.msra.mxu0 0.0
      %610 = vmatprep.subr.mxu0 0.0
      %611 = vmatpush1.msra.mxu0 0.0
      %612 = vmatprep.subr.mxu0 0.0
      %613 = vmatpush1.msra.mxu0 0.0
      %614 = vmatprep.subr.mxu0 0.0
      %615 = vmatpush1.msra.mxu0 0.0
      %616 = vmatprep.subr.mxu0 0.0
      %617 = vmatpush1.msra.mxu0 0.0
      %618 = vmatprep.subr.mxu0 0.0
      %619 = vmatpush1.msra.mxu0 0.0
      %620 = vmatprep.subr.mxu0 0.0
      %621 = vmatpush1.msra.mxu0 0.0
      %622 = vmatprep.subr.mxu0 0.0
      %623 = vmatpush1.msra.mxu0 0.0
      %624 = vmatprep.subr.mxu0 0.0
      %625 = vmatpush1.msra.mxu0 0.0
      %626 = vmatprep.subr.mxu0 0.0
      %627 = vmatpush1.msra.mxu0 0.0
      %628 = vmatprep.subr.mxu0 0.0
      %629 = vmatpush1.msra.mxu0 0.0
      %630 = vmatprep.subr.mxu0 0.0
      %631 = vmatpush1.msra.mxu0 0.0
      %632 = vmatprep.subr.mxu0 0.0
      %633 = vmatpush1.msra.mxu0 0.0
      %634 = vmatprep.subr.mxu0 0.0
      %635 = vmatpush1.msra.mxu0 0.0
      %636 = vmatprep.subr.mxu0 0.0
      %637 = vmatpush1.msra.mxu0 0.0
      %638 = vmatprep.subr.mxu0 0.0
      %639 = vmatpush1.msra.mxu0 0.0
      %640 = vmatprep.mubr.f32.mxu0 0.0
      %641 = vmatmul.mubr.f32.gmra.mrb[0].mxu0 %v470
      %v642 = vpop.f32.mrb[0].mxu0
      %v643 = vadd.f32 %v451, %v642
      %v644 = vpop.f32.mrb[0].mxu0
      %645 = vmatprep.mubr.f32.mxu0 0.0
      %646 = vmatmul.mubr.f32.gmra.mrb[0].mxu0 %v473
      %v647 = vpop.f32.mrb[0].mxu0
      %v648 = vadd.f32 %v456, %v647
      %v649 = vpop.f32.mrb[0].mxu0
      %650 = vmatprep.mubr.f32.mxu0 0.0
      %651 = vmatmul.mubr.f32.gmra.mrb[0].mxu0 %v476
      %v652 = vpop.f32.mrb[0].mxu0
      %v653 = vadd.f32 %v461, %v652
      %v654 = vpop.f32.mrb[0].mxu0
      %655 = vmatprep.mubr.f32.mxu0 0.0
      %656 = vmatmul.mubr.f32.gmra.mrb[0].mxu0 %v479
      %v657 = vpop.f32.mrb[0].mxu0
      %v658 = vadd.f32 %v466, %v657
      %v659 = vpop.f32.mrb[0].mxu0
      %660 = vdwg.mxu0
      %v661 = vld [vmem:[%s246] sm:$0x77]
      %v662 = vld [vmem:[%s246 + $0x8] sm:$0x7]
      %s663 = scalar_lea.vmem %s1, 64
      %v664 = vld [vmem:[%s663] sm:$0xff]
      %v665 = vld [vmem:[%s663 + $0x8] sm:$0xff]
      %v666 = vld [vmem:[%s663 + $0x10] sm:$0xff]
      %v667 = vld [vmem:[%s663 + $0x18] sm:$0xff]
      %v670 = vcombine.high %v661, %v661
      %671 = vrot.lane.b32.xlu0 %v661, 126
      %v672 = vpop.permute.xlu0 %671
      %673 = vrot.lane.b32.xlu0 %v670, 126
      %v674 = vpop.permute.xlu0 %673
      %675 = vrot.lane.b32.xlu0 %v662, 126
      %v676 = vpop.permute.xlu0 %675
      %vm677 = vcmask 1031168
      %v678 = vsel %vm677, %v672, %v674
      %v679 = vsel %vm677, %v674, %v676
      %v681 = vsel %vm275, %v664, 0
      %v684 = vsel %vm275, %v665, 0
      %v687 = vsel %vm275, %v666, 0
      %v690 = vsel %vm275, %v667, 0
      %v692 = vsel %vm288, %v678, 0
      %v694 = vsel %vm288, %v679, 0
      %v696 = vsel %vm288, %v676, 0
      %698 = vmatprep.subr.mxu0 %v694
      %699 = vmatpush1.msra.mxu0 %v692
      %700 = vmatprep.subr.mxu0 0.0
      %701 = vmatpush1.msra.mxu0 0.0
      %702 = vmatprep.subr.mxu0 0.0
      %703 = vmatpush1.msra.mxu0 0.0
      %704 = vmatprep.subr.mxu0 0.0
      %705 = vmatpush1.msra.mxu0 0.0
      %706 = vmatprep.subr.mxu0 0.0
      %707 = vmatpush1.msra.mxu0 0.0
      %708 = vmatprep.subr.mxu0 0.0
      %709 = vmatpush1.msra.mxu0 0.0
      %710 = vmatprep.subr.mxu0 0.0
      %711 = vmatpush1.msra.mxu0 0.0
      %712 = vmatprep.subr.mxu0 0.0
      %713 = vmatpush1.msra.mxu0 0.0
      %714 = vmatprep.subr.mxu0 0.0
      %715 = vmatpush1.msra.mxu0 0.0
      %716 = vmatprep.subr.mxu0 0.0
      %717 = vmatpush1.msra.mxu0 0.0
      %718 = vmatprep.subr.mxu0 0.0
      %719 = vmatpush1.msra.mxu0 0.0
      %720 = vmatprep.subr.mxu0 0.0
      %721 = vmatpush1.msra.mxu0 0.0
      %722 = vmatprep.subr.mxu0 0.0
      %723 = vmatpush1.msra.mxu0 0.0
      %724 = vmatprep.subr.mxu0 0.0
      %725 = vmatpush1.msra.mxu0 0.0
      %726 = vmatprep.subr.mxu0 0.0
      %727 = vmatpush1.msra.mxu0 0.0
      %728 = vmatprep.subr.mxu0 0.0
      %729 = vmatpush1.msra.mxu0 0.0
      %730 = vmatprep.subr.mxu0 0.0
      %731 = vmatpush1.msra.mxu0 0.0
      %732 = vmatprep.subr.mxu0 0.0
      %733 = vmatpush1.msra.mxu0 0.0
      %734 = vmatprep.subr.mxu0 0.0
      %735 = vmatpush1.msra.mxu0 0.0
      %736 = vmatprep.subr.mxu0 0.0
      %737 = vmatpush1.msra.mxu0 0.0
      %738 = vmatprep.subr.mxu0 0.0
      %739 = vmatpush1.msra.mxu0 0.0
      %740 = vmatprep.subr.mxu0 0.0
      %741 = vmatpush1.msra.mxu0 0.0
      %742 = vmatprep.subr.mxu0 0.0
      %743 = vmatpush1.msra.mxu0 0.0
      %744 = vmatprep.subr.mxu0 0.0
      %745 = vmatpush1.msra.mxu0 0.0
      %746 = vmatprep.subr.mxu0 0.0
      %747 = vmatpush1.msra.mxu0 0.0
      %748 = vmatprep.subr.mxu0 0.0
      %749 = vmatpush1.msra.mxu0 0.0
      %750 = vmatprep.subr.mxu0 0.0
      %751 = vmatpush1.msra.mxu0 0.0
      %752 = vmatprep.subr.mxu0 0.0
      %753 = vmatpush1.msra.mxu0 0.0
      %754 = vmatprep.subr.mxu0 0.0
      %755 = vmatpush1.msra.mxu0 0.0
      %756 = vmatprep.subr.mxu0 0.0
      %757 = vmatpush1.msra.mxu0 0.0
      %758 = vmatprep.subr.mxu0 0.0
      %759 = vmatpush1.msra.mxu0 0.0
      %760 = vmatprep.subr.mxu0 0.0
      %761 = vmatpush1.msra.mxu0 0.0
      %762 = vmatprep.mubr.f32.mxu0 0.0
      %763 = vmatmul.mubr.f32.gmra.mrb[0].mxu0 %v681
      %v764 = vpop.f32.mrb[0].mxu0
      %v765 = vadd.f32 0.0, %v764
      %v766 = vpop.f32.mrb[0].mxu0
      %v767 = vadd.f32 0.0, %v766
      %768 = vmatprep.mubr.f32.mxu0 0.0
      %769 = vmatmul.mubr.f32.gmra.mrb[0].mxu0 %v684
      %v770 = vpop.f32.mrb[0].mxu0
      %v771 = vadd.f32 0.0, %v770
      %v772 = vpop.f32.mrb[0].mxu0
      %v773 = vadd.f32 0.0, %v772
      %774 = vmatprep.mubr.f32.mxu0 0.0
      %775 = vmatmul.mubr.f32.gmra.mrb[0].mxu0 %v687
      %v776 = vpop.f32.mrb[0].mxu0
      %v777 = vadd.f32 0.0, %v776
      %v778 = vpop.f32.mrb[0].mxu0
      %v779 = vadd.f32 0.0, %v778
      %780 = vmatprep.mubr.f32.mxu0 0.0
      %781 = vmatmul.mubr.f32.gmra.mrb[0].mxu0 %v690
      %v782 = vpop.f32.mrb[0].mxu0
      %v783 = vadd.f32 0.0, %v782
      %v784 = vpop.f32.mrb[0].mxu0
      %v785 = vadd.f32 0.0, %v784
      %786 = vdwg.mxu0
      %787 = vmatprep.subr.mxu0 0.0
      %788 = vmatpush1.msra.mxu0 %v696
      %789 = vmatprep.subr.mxu0 0.0
      %790 = vmatpush1.msra.mxu0 0.0
      %791 = vmatprep.subr.mxu0 0.0
      %792 = vmatpush1.msra.mxu0 0.0
      %793 = vmatprep.subr.mxu0 0.0
      %794 = vmatpush1.msra.mxu0 0.0
      %795 = vmatprep.subr.mxu0 0.0
      %796 = vmatpush1.msra.mxu0 0.0
      %797 = vmatprep.subr.mxu0 0.0
      %798 = vmatpush1.msra.mxu0 0.0
      %799 = vmatprep.subr.mxu0 0.0
      %800 = vmatpush1.msra.mxu0 0.0
      %801 = vmatprep.subr.mxu0 0.0
      %802 = vmatpush1.msra.mxu0 0.0
      %803 = vmatprep.subr.mxu0 0.0
      %804 = vmatpush1.msra.mxu0 0.0
      %805 = vmatprep.subr.mxu0 0.0
      %806 = vmatpush1.msra.mxu0 0.0
      %807 = vmatprep.subr.mxu0 0.0
      %808 = vmatpush1.msra.mxu0 0.0
      %809 = vmatprep.subr.mxu0 0.0
      %810 = vmatpush1.msra.mxu0 0.0
      %811 = vmatprep.subr.mxu0 0.0
      %812 = vmatpush1.msra.mxu0 0.0
      %813 = vmatprep.subr.mxu0 0.0
      %814 = vmatpush1.msra.mxu0 0.0
      %815 = vmatprep.subr.mxu0 0.0
      %816 = vmatpush1.msra.mxu0 0.0
      %817 = vmatprep.subr.mxu0 0.0
      %818 = vmatpush1.msra.mxu0 0.0
      %819 = vmatprep.subr.mxu0 0.0
      %820 = vmatpush1.msra.mxu0 0.0
      %821 = vmatprep.subr.mxu0 0.0
      %822 = vmatpush1.msra.mxu0 0.0
      %823 = vmatprep.subr.mxu0 0.0
      %824 = vmatpush1.msra.mxu0 0.0
      %825 = vmatprep.subr.mxu0 0.0
      %826 = vmatpush1.msra.mxu0 0.0
      %827 = vmatprep.subr.mxu0 0.0
      %828 = vmatpush1.msra.mxu0 0.0
      %829 = vmatprep.subr.mxu0 0.0
      %830 = vmatpush1.msra.mxu0 0.0
      %831 = vmatprep.subr.mxu0 0.0
      %832 = vmatpush1.msra.mxu0 0.0
      %833 = vmatprep.subr.mxu0 0.0
      %834 = vmatpush1.msra.mxu0 0.0
      %835 = vmatprep.subr.mxu0 0.0
      %836 = vmatpush1.msra.mxu0 0.0
      %837 = vmatprep.subr.mxu0 0.0
      %838 = vmatpush1.msra.mxu0 0.0
      %839 = vmatprep.subr.mxu0 0.0
      %840 = vmatpush1.msra.mxu0 0.0
      %841 = vmatprep.subr.mxu0 0.0
      %842 = vmatpush1.msra.mxu0 0.0
      %843 = vmatprep.subr.mxu0 0.0
      %844 = vmatpush1.msra.mxu0 0.0
      %845 = vmatprep.subr.mxu0 0.0
      %846 = vmatpush1.msra.mxu0 0.0
      %847 = vmatprep.subr.mxu0 0.0
      %848 = vmatpush1.msra.mxu0 0.0
      %849 = vmatprep.subr.mxu0 0.0
      %850 = vmatpush1.msra.mxu0 0.0
      %851 = vmatprep.mubr.f32.mxu0 0.0
      %852 = vmatmul.mubr.f32.gmra.mrb[0].mxu0 %v681
      %v853 = vpop.f32.mrb[0].mxu0
      %v854 = vadd.f32 0.0, %v853
      %v855 = vpop.f32.mrb[0].mxu0
      %856 = vmatprep.mubr.f32.mxu0 0.0
      %857 = vmatmul.mubr.f32.gmra.mrb[0].mxu0 %v684
      %v858 = vpop.f32.mrb[0].mxu0
      %v859 = vadd.f32 0.0, %v858
      %v860 = vpop.f32.mrb[0].mxu0
      %861 = vmatprep.mubr.f32.mxu0 0.0
      %862 = vmatmul.mubr.f32.gmra.mrb[0].mxu0 %v687
      %v863 = vpop.f32.mrb[0].mxu0
      %v864 = vadd.f32 0.0, %v863
      %v865 = vpop.f32.mrb[0].mxu0
      %866 = vmatprep.mubr.f32.mxu0 0.0
      %867 = vmatmul.mubr.f32.gmra.mrb[0].mxu0 %v690
      %v868 = vpop.f32.mrb[0].mxu0
      %v869 = vadd.f32 0.0, %v868
      %v870 = vpop.f32.mrb[0].mxu0
      %871 = vdwg.mxu0
      %v872 = vadd.f32 %v554, %v765
      %v873 = vadd.f32 %v556, %v767
      %v874 = vadd.f32 %v643, %v854
      %v875 = vadd.f32 %v560, %v771
      %v876 = vadd.f32 %v562, %v773
      %v877 = vadd.f32 %v648, %v859
      %v878 = vadd.f32 %v566, %v777
      %v879 = vadd.f32 %v568, %v779
      %v880 = vadd.f32 %v653, %v864
      %v881 = vadd.f32 %v572, %v783
      %v882 = vadd.f32 %v574, %v785
      %v883 = vadd.f32 %v658, %v869
      %v884 = vld [vmem:[%s246] sm:$0x77]
      %v885 = vld [vmem:[%s246 + $0x8] sm:$0x7]
      %s886 = scalar_lea.vmem %s1, 96
      %v887 = vld [vmem:[%s886] sm:$0xff]
      %v888 = vld [vmem:[%s886 + $0x8] sm:$0xff]
      %v889 = vld [vmem:[%s886 + $0x10] sm:$0xff]
      %v890 = vld [vmem:[%s886 + $0x18] sm:$0xff]
      %v893 = vcombine.high %v884, %v884
      %894 = vrot.lane.b32.xlu0 %v884, 110
      %v895 = vpop.permute.xlu0 %894
      %896 = vrot.lane.b32.xlu0 %v893, 110
      %v897 = vpop.permute.xlu0 %896
      %898 = vrot.lane.b32.xlu0 %v885, 110
      %v899 = vpop.permute.xlu0 %898
      %vm900 = vcmask 900096
      %v901 = vsel %vm900, %v895, %v897
      %v902 = vsel %vm900, %v897, %v899
      %v904 = vsel %vm275, %v887, 0
      %v907 = vsel %vm275, %v888, 0
      %v910 = vsel %vm275, %v889, 0
      %v913 = vsel %vm275, %v890, 0
      %v915 = vsel %vm288, %v901, 0
      %v917 = vsel %vm288, %v902, 0
      %v919 = vsel %vm288, %v899, 0
      %921 = vmatprep.subr.mxu0 %v917
      %922 = vmatpush1.msra.mxu0 %v915
      %923 = vmatprep.subr.mxu0 0.0
      %924 = vmatpush1.msra.mxu0 0.0
      %925 = vmatprep.subr.mxu0 0.0
      %926 = vmatpush1.msra.mxu0 0.0
      %927 = vmatprep.subr.mxu0 0.0
      %928 = vmatpush1.msra.mxu0 0.0
      %929 = vmatprep.subr.mxu0 0.0
      %930 = vmatpush1.msra.mxu0 0.0
      %931 = vmatprep.subr.mxu0 0.0
      %932 = vmatpush1.msra.mxu0 0.0
      %933 = vmatprep.subr.mxu0 0.0
      %934 = vmatpush1.msra.mxu0 0.0
      %935 = vmatprep.subr.mxu0 0.0
      %936 = vmatpush1.msra.mxu0 0.0
      %937 = vmatprep.subr.mxu0 0.0
      %938 = vmatpush1.msra.mxu0 0.0
      %939 = vmatprep.subr.mxu0 0.0
      %940 = vmatpush1.msra.mxu0 0.0
      %941 = vmatprep.subr.mxu0 0.0
      %942 = vmatpush1.msra.mxu0 0.0
      %943 = vmatprep.subr.mxu0 0.0
      %944 = vmatpush1.msra.mxu0 0.0
      %945 = vmatprep.subr.mxu0 0.0
      %946 = vmatpush1.msra.mxu0 0.0
      %947 = vmatprep.subr.mxu0 0.0
      %948 = vmatpush1.msra.mxu0 0.0
      %949 = vmatprep.subr.mxu0 0.0
      %950 = vmatpush1.msra.mxu0 0.0
      %951 = vmatprep.subr.mxu0 0.0
      %952 = vmatpush1.msra.mxu0 0.0
      %953 = vmatprep.subr.mxu0 0.0
      %954 = vmatpush1.msra.mxu0 0.0
      %955 = vmatprep.subr.mxu0 0.0
      %956 = vmatpush1.msra.mxu0 0.0
      %957 = vmatprep.subr.mxu0 0.0
      %958 = vmatpush1.msra.mxu0 0.0
      %959 = vmatprep.subr.mxu0 0.0
      %960 = vmatpush1.msra.mxu0 0.0
      %961 = vmatprep.subr.mxu0 0.0
      %962 = vmatpush1.msra.mxu0 0.0
      %963 = vmatprep.subr.mxu0 0.0
      %964 = vmatpush1.msra.mxu0 0.0
      %965 = vmatprep.subr.mxu0 0.0
      %966 = vmatpush1.msra.mxu0 0.0
      %967 = vmatprep.subr.mxu0 0.0
      %968 = vmatpush1.msra.mxu0 0.0
      %969 = vmatprep.subr.mxu0 0.0
      %970 = vmatpush1.msra.mxu0 0.0
      %971 = vmatprep.subr.mxu0 0.0
      %972 = vmatpush1.msra.mxu0 0.0
      %973 = vmatprep.subr.mxu0 0.0
      %974 = vmatpush1.msra.mxu0 0.0
      %975 = vmatprep.subr.mxu0 0.0
      %976 = vmatpush1.msra.mxu0 0.0
      %977 = vmatprep.subr.mxu0 0.0
      %978 = vmatpush1.msra.mxu0 0.0
      %979 = vmatprep.subr.mxu0 0.0
      %980 = vmatpush1.msra.mxu0 0.0
      %981 = vmatprep.subr.mxu0 0.0
      %982 = vmatpush1.msra.mxu0 0.0
      %983 = vmatprep.subr.mxu0 0.0
      %984 = vmatpush1.msra.mxu0 0.0
      %985 = vmatprep.mubr.f32.mxu0 0.0
      %986 = vmatmul.mubr.f32.gmra.mrb[0].mxu0 %v904
      %v987 = vpop.f32.mrb[0].mxu0
      %v988 = vadd.f32 0.0, %v987
      %v989 = vpop.f32.mrb[0].mxu0
      %v990 = vadd.f32 0.0, %v989
      %991 = vmatprep.mubr.f32.mxu0 0.0
      %992 = vmatmul.mubr.f32.gmra.mrb[0].mxu0 %v907
      %v993 = vpop.f32.mrb[0].mxu0
      %v994 = vadd.f32 0.0, %v993
      %v995 = vpop.f32.mrb[0].mxu0
      %v996 = vadd.f32 0.0, %v995
      %997 = vmatprep.mubr.f32.mxu0 0.0
      %998 = vmatmul.mubr.f32.gmra.mrb[0].mxu0 %v910
      %v999 = vpop.f32.mrb[0].mxu0
      %v1000 = vadd.f32 0.0, %v999
      %v1001 = vpop.f32.mrb[0].mxu0
      %v1002 = vadd.f32 0.0, %v1001
      %1003 = vmatprep.mubr.f32.mxu0 0.0
      %1004 = vmatmul.mubr.f32.gmra.mrb[0].mxu0 %v913
      %v1005 = vpop.f32.mrb[0].mxu0
      %v1006 = vadd.f32 0.0, %v1005
      %v1007 = vpop.f32.mrb[0].mxu0
      %v1008 = vadd.f32 0.0, %v1007
      %1009 = vdwg.mxu0
      %1010 = vmatprep.subr.mxu0 0.0
      %1011 = vmatpush1.msra.mxu0 %v919
      %1012 = vmatprep.subr.mxu0 0.0
      %1013 = vmatpush1.msra.mxu0 0.0
      %1014 = vmatprep.subr.mxu0 0.0
      %1015 = vmatpush1.msra.mxu0 0.0
      %1016 = vmatprep.subr.mxu0 0.0
      %1017 = vmatpush1.msra.mxu0 0.0
      %1018 = vmatprep.subr.mxu0 0.0
      %1019 = vmatpush1.msra.mxu0 0.0
      %1020 = vmatprep.subr.mxu0 0.0
      %1021 = vmatpush1.msra.mxu0 0.0
      %1022 = vmatprep.subr.mxu0 0.0
      %1023 = vmatpush1.msra.mxu0 0.0
      %1024 = vmatprep.subr.mxu0 0.0
      %1025 = vmatpush1.msra.mxu0 0.0
      %1026 = vmatprep.subr.mxu0 0.0
      %1027 = vmatpush1.msra.mxu0 0.0
      %1028 = vmatprep.subr.mxu0 0.0
      %1029 = vmatpush1.msra.mxu0 0.0
      %1030 = vmatprep.subr.mxu0 0.0
      %1031 = vmatpush1.msra.mxu0 0.0
      %1032 = vmatprep.subr.mxu0 0.0
      %1033 = vmatpush1.msra.mxu0 0.0
      %1034 = vmatprep.subr.mxu0 0.0
      %1035 = vmatpush1.msra.mxu0 0.0
      %1036 = vmatprep.subr.mxu0 0.0
      %1037 = vmatpush1.msra.mxu0 0.0
      %1038 = vmatprep.subr.mxu0 0.0
      %1039 = vmatpush1.msra.mxu0 0.0
      %1040 = vmatprep.subr.mxu0 0.0
      %1041 = vmatpush1.msra.mxu0 0.0
      %1042 = vmatprep.subr.mxu0 0.0
      %1043 = vmatpush1.msra.mxu0 0.0
      %1044 = vmatprep.subr.mxu0 0.0
      %1045 = vmatpush1.msra.mxu0 0.0
      %1046 = vmatprep.subr.mxu0 0.0
      %1047 = vmatpush1.msra.mxu0 0.0
      %1048 = vmatprep.subr.mxu0 0.0
      %1049 = vmatpush1.msra.mxu0 0.0
      %1050 = vmatprep.subr.mxu0 0.0
      %1051 = vmatpush1.msra.mxu0 0.0
      %1052 = vmatprep.subr.mxu0 0.0
      %1053 = vmatpush1.msra.mxu0 0.0
      %1054 = vmatprep.subr.mxu0 0.0
      %1055 = vmatpush1.msra.mxu0 0.0
      %1056 = vmatprep.subr.mxu0 0.0
      %1057 = vmatpush1.msra.mxu0 0.0
      %1058 = vmatprep.subr.mxu0 0.0
      %1059 = vmatpush1.msra.mxu0 0.0
      %1060 = vmatprep.subr.mxu0 0.0
      %1061 = vmatpush1.msra.mxu0 0.0
      %1062 = vmatprep.subr.mxu0 0.0
      %1063 = vmatpush1.msra.mxu0 0.0
      %1064 = vmatprep.subr.mxu0 0.0
      %1065 = vmatpush1.msra.mxu0 0.0
      %1066 = vmatprep.subr.mxu0 0.0
      %1067 = vmatpush1.msra.mxu0 0.0
      %1068 = vmatprep.subr.mxu0 0.0
      %1069 = vmatpush1.msra.mxu0 0.0
      %1070 = vmatprep.subr.mxu0 0.0
      %1071 = vmatpush1.msra.mxu0 0.0
      %1072 = vmatprep.subr.mxu0 0.0
      %1073 = vmatpush1.msra.mxu0 0.0
      %1074 = vmatprep.mubr.f32.mxu0 0.0
      %1075 = vmatmul.mubr.f32.gmra.mrb[0].mxu0 %v904
      %v1076 = vpop.f32.mrb[0].mxu0
      %v1077 = vadd.f32 0.0, %v1076
      %v1078 = vpop.f32.mrb[0].mxu0
      %1079 = vmatprep.mubr.f32.mxu0 0.0
      %1080 = vmatmul.mubr.f32.gmra.mrb[0].mxu0 %v907
      %v1081 = vpop.f32.mrb[0].mxu0
      %v1082 = vadd.f32 0.0, %v1081
      %v1083 = vpop.f32.mrb[0].mxu0
      %1084 = vmatprep.mubr.f32.mxu0 0.0
      %1085 = vmatmul.mubr.f32.gmra.mrb[0].mxu0 %v910
      %v1086 = vpop.f32.mrb[0].mxu0
      %v1087 = vadd.f32 0.0, %v1086
      %v1088 = vpop.f32.mrb[0].mxu0
      %1089 = vmatprep.mubr.f32.mxu0 0.0
      %1090 = vmatmul.mubr.f32.gmra.mrb[0].mxu0 %v913
      %v1091 = vpop.f32.mrb[0].mxu0
      %v1092 = vadd.f32 0.0, %v1091
      %v1093 = vpop.f32.mrb[0].mxu0
      %1094 = vdwg.mxu0
      %v1095 = vadd.f32 %v872, %v988
      %v1096 = vadd.f32 %v873, %v990
      %v1097 = vadd.f32 %v874, %v1077
      %v1098 = vadd.f32 %v875, %v994
      %v1099 = vadd.f32 %v876, %v996
      %v1100 = vadd.f32 %v877, %v1082
      %v1101 = vadd.f32 %v878, %v1000
      %v1102 = vadd.f32 %v879, %v1002
      %v1103 = vadd.f32 %v880, %v1087
      %v1104 = vadd.f32 %v881, %v1006
      %v1105 = vadd.f32 %v882, %v1008
      %v1106 = vadd.f32 %v883, %v1092
      %v1107 = vld [vmem:[%s246] sm:$0x77]
      %v1108 = vld [vmem:[%s246 + $0x8] sm:$0x7]
      %s1109 = scalar_lea.vmem %s1, 128
      %v1110 = vld [vmem:[%s1109] sm:$0xff]
      %v1111 = vld [vmem:[%s1109 + $0x8] sm:$0xff]
      %v1112 = vld [vmem:[%s1109 + $0x10] sm:$0xff]
      %v1113 = vld [vmem:[%s1109 + $0x18] sm:$0xff]
      %v1116 = vcombine.high %v1107, %v1107
      %1117 = vrot.lane.b32.xlu0 %v1107, 109
      %v1118 = vpop.permute.xlu0 %1117
      %1119 = vrot.lane.b32.xlu0 %v1116, 109
      %v1120 = vpop.permute.xlu0 %1119
      %1121 = vrot.lane.b32.xlu0 %v1108, 109
      %v1122 = vpop.permute.xlu0 %1121
      %vm1123 = vcmask 891904
      %v1124 = vsel %vm1123, %v1118, %v1120
      %v1125 = vsel %vm1123, %v1120, %v1122
      %v1127 = vsel %vm275, %v1110, 0
      %v1130 = vsel %vm275, %v1111, 0
      %v1133 = vsel %vm275, %v1112, 0
      %v1136 = vsel %vm275, %v1113, 0
      %v1138 = vsel %vm288, %v1124, 0
      %v1140 = vsel %vm288, %v1125, 0
      %v1142 = vsel %vm288, %v1122, 0
      %1144 = vmatprep.subr.mxu0 %v1140
      %1145 = vmatpush1.msra.mxu0 %v1138
      %1146 = vmatprep.subr.mxu0 0.0
      %1147 = vmatpush1.msra.mxu0 0.0
      %1148 = vmatprep.subr.mxu0 0.0
      %1149 = vmatpush1.msra.mxu0 0.0
      %1150 = vmatprep.subr.mxu0 0.0
      %1151 = vmatpush1.msra.mxu0 0.0
      %1152 = vmatprep.subr.mxu0 0.0
      %1153 = vmatpush1.msra.mxu0 0.0
      %1154 = vmatprep.subr.mxu0 0.0
      %1155 = vmatpush1.msra.mxu0 0.0
      %1156 = vmatprep.subr.mxu0 0.0
      %1157 = vmatpush1.msra.mxu0 0.0
      %1158 = vmatprep.subr.mxu0 0.0
      %1159 = vmatpush1.msra.mxu0 0.0
      %1160 = vmatprep.subr.mxu0 0.0
      %1161 = vmatpush1.msra.mxu0 0.0
      %1162 = vmatprep.subr.mxu0 0.0
      %1163 = vmatpush1.msra.mxu0 0.0
      %1164 = vmatprep.subr.mxu0 0.0
      %1165 = vmatpush1.msra.mxu0 0.0
      %1166 = vmatprep.subr.mxu0 0.0
      %1167 = vmatpush1.msra.mxu0 0.0
      %1168 = vmatprep.subr.mxu0 0.0
      %1169 = vmatpush1.msra.mxu0 0.0
      %1170 = vmatprep.subr.mxu0 0.0
      %1171 = vmatpush1.msra.mxu0 0.0
      %1172 = vmatprep.subr.mxu0 0.0
      %1173 = vmatpush1.msra.mxu0 0.0
      %1174 = vmatprep.subr.mxu0 0.0
      %1175 = vmatpush1.msra.mxu0 0.0
      %1176 = vmatprep.subr.mxu0 0.0
      %1177 = vmatpush1.msra.mxu0 0.0
      %1178 = vmatprep.subr.mxu0 0.0
      %1179 = vmatpush1.msra.mxu0 0.0
      %1180 = vmatprep.subr.mxu0 0.0
      %1181 = vmatpush1.msra.mxu0 0.0
      %1182 = vmatprep.subr.mxu0 0.0
      %1183 = vmatpush1.msra.mxu0 0.0
      %1184 = vmatprep.subr.mxu0 0.0
      %1185 = vmatpush1.msra.mxu0 0.0
      %1186 = vmatprep.subr.mxu0 0.0
      %1187 = vmatpush1.msra.mxu0 0.0
      %1188 = vmatprep.subr.mxu0 0.0
      %1189 = vmatpush1.msra.mxu0 0.0
      %1190 = vmatprep.subr.mxu0 0.0
      %1191 = vmatpush1.msra.mxu0 0.0
      %1192 = vmatprep.subr.mxu0 0.0
      %1193 = vmatpush1.msra.mxu0 0.0
      %1194 = vmatprep.subr.mxu0 0.0
      %1195 = vmatpush1.msra.mxu0 0.0
      %1196 = vmatprep.subr.mxu0 0.0
      %1197 = vmatpush1.msra.mxu0 0.0
      %1198 = vmatprep.subr.mxu0 0.0
      %1199 = vmatpush1.msra.mxu0 0.0
      %1200 = vmatprep.subr.mxu0 0.0
      %1201 = vmatpush1.msra.mxu0 0.0
      %1202 = vmatprep.subr.mxu0 0.0
      %1203 = vmatpush1.msra.mxu0 0.0
      %1204 = vmatprep.subr.mxu0 0.0
      %1205 = vmatpush1.msra.mxu0 0.0
      %1206 = vmatprep.subr.mxu0 0.0
      %1207 = vmatpush1.msra.mxu0 0.0
      %1208 = vmatprep.mubr.f32.mxu0 0.0
      %1209 = vmatmul.mubr.f32.gmra.mrb[0].mxu0 %v1127
      %v1210 = vpop.f32.mrb[0].mxu0
      %v1211 = vadd.f32 0.0, %v1210
      %v1212 = vpop.f32.mrb[0].mxu0
      %v1213 = vadd.f32 0.0, %v1212
      %1214 = vmatprep.mubr.f32.mxu0 0.0
      %1215 = vmatmul.mubr.f32.gmra.mrb[0].mxu0 %v1130
      %v1216 = vpop.f32.mrb[0].mxu0
      %v1217 = vadd.f32 0.0, %v1216
      %v1218 = vpop.f32.mrb[0].mxu0
      %v1219 = vadd.f32 0.0, %v1218
      %1220 = vmatprep.mubr.f32.mxu0 0.0
      %1221 = vmatmul.mubr.f32.gmra.mrb[0].mxu0 %v1133
      %v1222 = vpop.f32.mrb[0].mxu0
      %v1223 = vadd.f32 0.0, %v1222
      %v1224 = vpop.f32.mrb[0].mxu0
      %v1225 = vadd.f32 0.0, %v1224
      %1226 = vmatprep.mubr.f32.mxu0 0.0
      %1227 = vmatmul.mubr.f32.gmra.mrb[0].mxu0 %v1136
      %v1228 = vpop.f32.mrb[0].mxu0
      %v1229 = vadd.f32 0.0, %v1228
      %v1230 = vpop.f32.mrb[0].mxu0
      %v1231 = vadd.f32 0.0, %v1230
      %1232 = vdwg.mxu0
      %1233 = vmatprep.subr.mxu0 0.0
      %1234 = vmatpush1.msra.mxu0 %v1142
      %1235 = vmatprep.subr.mxu0 0.0
      %1236 = vmatpush1.msra.mxu0 0.0
      %1237 = vmatprep.subr.mxu0 0.0
      %1238 = vmatpush1.msra.mxu0 0.0
      %1239 = vmatprep.subr.mxu0 0.0
      %1240 = vmatpush1.msra.mxu0 0.0
      %1241 = vmatprep.subr.mxu0 0.0
      %1242 = vmatpush1.msra.mxu0 0.0
      %1243 = vmatprep.subr.mxu0 0.0
      %1244 = vmatpush1.msra.mxu0 0.0
      %1245 = vmatprep.subr.mxu0 0.0
      %1246 = vmatpush1.msra.mxu0 0.0
      %1247 = vmatprep.subr.mxu0 0.0
      %1248 = vmatpush1.msra.mxu0 0.0
      %1249 = vmatprep.subr.mxu0 0.0
      %1250 = vmatpush1.msra.mxu0 0.0
      %1251 = vmatprep.subr.mxu0 0.0
      %1252 = vmatpush1.msra.mxu0 0.0
      %1253 = vmatprep.subr.mxu0 0.0
      %1254 = vmatpush1.msra.mxu0 0.0
      %1255 = vmatprep.subr.mxu0 0.0
      %1256 = vmatpush1.msra.mxu0 0.0
      %1257 = vmatprep.subr.mxu0 0.0
      %1258 = vmatpush1.msra.mxu0 0.0
      %1259 = vmatprep.subr.mxu0 0.0
      %1260 = vmatpush1.msra.mxu0 0.0
      %1261 = vmatprep.subr.mxu0 0.0
      %1262 = vmatpush1.msra.mxu0 0.0
      %1263 = vmatprep.subr.mxu0 0.0
      %1264 = vmatpush1.msra.mxu0 0.0
      %1265 = vmatprep.subr.mxu0 0.0
      %1266 = vmatpush1.msra.mxu0 0.0
      %1267 = vmatprep.subr.mxu0 0.0
      %1268 = vmatpush1.msra.mxu0 0.0
      %1269 = vmatprep.subr.mxu0 0.0
      %1270 = vmatpush1.msra.mxu0 0.0
      %1271 = vmatprep.subr.mxu0 0.0
      %1272 = vmatpush1.msra.mxu0 0.0
      %1273 = vmatprep.subr.mxu0 0.0
      %1274 = vmatpush1.msra.mxu0 0.0
      %1275 = vmatprep.subr.mxu0 0.0
      %1276 = vmatpush1.msra.mxu0 0.0
      %1277 = vmatprep.subr.mxu0 0.0
      %1278 = vmatpush1.msra.mxu0 0.0
      %1279 = vmatprep.subr.mxu0 0.0
      %1280 = vmatpush1.msra.mxu0 0.0
      %1281 = vmatprep.subr.mxu0 0.0
      %1282 = vmatpush1.msra.mxu0 0.0
      %1283 = vmatprep.subr.mxu0 0.0
      %1284 = vmatpush1.msra.mxu0 0.0
      %1285 = vmatprep.subr.mxu0 0.0
      %1286 = vmatpush1.msra.mxu0 0.0
      %1287 = vmatprep.subr.mxu0 0.0
      %1288 = vmatpush1.msra.mxu0 0.0
      %1289 = vmatprep.subr.mxu0 0.0
      %1290 = vmatpush1.msra.mxu0 0.0
      %1291 = vmatprep.subr.mxu0 0.0
      %1292 = vmatpush1.msra.mxu0 0.0
      %1293 = vmatprep.subr.mxu0 0.0
      %1294 = vmatpush1.msra.mxu0 0.0
      %1295 = vmatprep.subr.mxu0 0.0
      %1296 = vmatpush1.msra.mxu0 0.0
      %1297 = vmatprep.mubr.f32.mxu0 0.0
      %1298 = vmatmul.mubr.f32.gmra.mrb[0].mxu0 %v1127
      %v1299 = vpop.f32.mrb[0].mxu0
      %v1300 = vadd.f32 0.0, %v1299
      %v1301 = vpop.f32.mrb[0].mxu0
      %1302 = vmatprep.mubr.f32.mxu0 0.0
      %1303 = vmatmul.mubr.f32.gmra.mrb[0].mxu0 %v1130
      %v1304 = vpop.f32.mrb[0].mxu0
      %v1305 = vadd.f32 0.0, %v1304
      %v1306 = vpop.f32.mrb[0].mxu0
      %1307 = vmatprep.mubr.f32.mxu0 0.0
      %1308 = vmatmul.mubr.f32.gmra.mrb[0].mxu0 %v1133
      %v1309 = vpop.f32.mrb[0].mxu0
      %v1310 = vadd.f32 0.0, %v1309
      %v1311 = vpop.f32.mrb[0].mxu0
      %1312 = vmatprep.mubr.f32.mxu0 0.0
      %1313 = vmatmul.mubr.f32.gmra.mrb[0].mxu0 %v1136
      %v1314 = vpop.f32.mrb[0].mxu0
      %v1315 = vadd.f32 0.0, %v1314
      %v1316 = vpop.f32.mrb[0].mxu0
      %1317 = vdwg.mxu0
      %v1318 = vadd.f32 %v1095, %v1211
      %v1319 = vadd.f32 %v1096, %v1213
      %v1320 = vadd.f32 %v1097, %v1300
      %v1321 = vadd.f32 %v1098, %v1217
      %v1322 = vadd.f32 %v1099, %v1219
      %v1323 = vadd.f32 %v1100, %v1305
      %v1324 = vadd.f32 %v1101, %v1223
      %v1325 = vadd.f32 %v1102, %v1225
      %v1326 = vadd.f32 %v1103, %v1310
      %v1327 = vadd.f32 %v1104, %v1229
      %v1328 = vadd.f32 %v1105, %v1231
      %v1329 = vadd.f32 %v1106, %v1315
      %v1330 = vld [vmem:[%s246] sm:$0x77]
      %v1331 = vld [vmem:[%s246 + $0x8] sm:$0x7]
      %s1332 = scalar_lea.vmem %s1, 160
      %v1333 = vld [vmem:[%s1332] sm:$0xff]
      %v1334 = vld [vmem:[%s1332 + $0x8] sm:$0xff]
      %v1335 = vld [vmem:[%s1332 + $0x10] sm:$0xff]
      %v1336 = vld [vmem:[%s1332 + $0x18] sm:$0xff]
      %v1339 = vcombine.high %v1330, %v1330
      %1340 = vrot.lane.b32.xlu0 %v1330, 108
      %v1341 = vpop.permute.xlu0 %1340
      %1342 = vrot.lane.b32.xlu0 %v1339, 108
      %v1343 = vpop.permute.xlu0 %1342
      %1344 = vrot.lane.b32.xlu0 %v1331, 108
      %v1345 = vpop.permute.xlu0 %1344
      %vm1346 = vcmask 883712
      %v1347 = vsel %vm1346, %v1341, %v1343
      %v1348 = vsel %vm1346, %v1343, %v1345
      %v1350 = vsel %vm275, %v1333, 0
      %v1353 = vsel %vm275, %v1334, 0
      %v1356 = vsel %vm275, %v1335, 0
      %v1359 = vsel %vm275, %v1336, 0
      %v1361 = vsel %vm288, %v1347, 0
      %v1363 = vsel %vm288, %v1348, 0
      %v1365 = vsel %vm288, %v1345, 0
      %1367 = vmatprep.subr.mxu0 %v1363
      %1368 = vmatpush1.msra.mxu0 %v1361
      %1369 = vmatprep.subr.mxu0 0.0
      %1370 = vmatpush1.msra.mxu0 0.0
      %1371 = vmatprep.subr.mxu0 0.0
      %1372 = vmatpush1.msra.mxu0 0.0
      %1373 = vmatprep.subr.mxu0 0.0
      %1374 = vmatpush1.msra.mxu0 0.0
      %1375 = vmatprep.subr.mxu0 0.0
      %1376 = vmatpush1.msra.mxu0 0.0
      %1377 = vmatprep.subr.mxu0 0.0
      %1378 = vmatpush1.msra.mxu0 0.0
      %1379 = vmatprep.subr.mxu0 0.0
      %1380 = vmatpush1.msra.mxu0 0.0
      %1381 = vmatprep.subr.mxu0 0.0
      %1382 = vmatpush1.msra.mxu0 0.0
      %1383 = vmatprep.subr.mxu0 0.0
      %1384 = vmatpush1.msra.mxu0 0.0
      %1385 = vmatprep.subr.mxu0 0.0
      %1386 = vmatpush1.msra.mxu0 0.0
      %1387 = vmatprep.subr.mxu0 0.0
      %1388 = vmatpush1.msra.mxu0 0.0
      %1389 = vmatprep.subr.mxu0 0.0
      %1390 = vmatpush1.msra.mxu0 0.0
      %1391 = vmatprep.subr.mxu0 0.0
      %1392 = vmatpush1.msra.mxu0 0.0
      %1393 = vmatprep.subr.mxu0 0.0
      %1394 = vmatpush1.msra.mxu0 0.0
      %1395 = vmatprep.subr.mxu0 0.0
      %1396 = vmatpush1.msra.mxu0 0.0
      %1397 = vmatprep.subr.mxu0 0.0
      %1398 = vmatpush1.msra.mxu0 0.0
      %1399 = vmatprep.subr.mxu0 0.0
      %1400 = vmatpush1.msra.mxu0 0.0
      %1401 = vmatprep.subr.mxu0 0.0
      %1402 = vmatpush1.msra.mxu0 0.0
      %1403 = vmatprep.subr.mxu0 0.0
      %1404 = vmatpush1.msra.mxu0 0.0
      %1405 = vmatprep.subr.mxu0 0.0
      %1406 = vmatpush1.msra.mxu0 0.0
      %1407 = vmatprep.subr.mxu0 0.0
      %1408 = vmatpush1.msra.mxu0 0.0
      %1409 = vmatprep.subr.mxu0 0.0
      %1410 = vmatpush1.msra.mxu0 0.0
      %1411 = vmatprep.subr.mxu0 0.0
      %1412 = vmatpush1.msra.mxu0 0.0
      %1413 = vmatprep.subr.mxu0 0.0
      %1414 = vmatpush1.msra.mxu0 0.0
      %1415 = vmatprep.subr.mxu0 0.0
      %1416 = vmatpush1.msra.mxu0 0.0
      %1417 = vmatprep.subr.mxu0 0.0
      %1418 = vmatpush1.msra.mxu0 0.0
      %1419 = vmatprep.subr.mxu0 0.0
      %1420 = vmatpush1.msra.mxu0 0.0
      %1421 = vmatprep.subr.mxu0 0.0
      %1422 = vmatpush1.msra.mxu0 0.0
      %1423 = vmatprep.subr.mxu0 0.0
      %1424 = vmatpush1.msra.mxu0 0.0
      %1425 = vmatprep.subr.mxu0 0.0
      %1426 = vmatpush1.msra.mxu0 0.0
      %1427 = vmatprep.subr.mxu0 0.0
      %1428 = vmatpush1.msra.mxu0 0.0
      %1429 = vmatprep.subr.mxu0 0.0
      %1430 = vmatpush1.msra.mxu0 0.0
      %1431 = vmatprep.mubr.f32.mxu0 0.0
      %1432 = vmatmul.mubr.f32.gmra.mrb[0].mxu0 %v1350
      %v1433 = vpop.f32.mrb[0].mxu0
      %v1434 = vadd.f32 0.0, %v1433
      %v1435 = vpop.f32.mrb[0].mxu0
      %v1436 = vadd.f32 0.0, %v1435
      %1437 = vmatprep.mubr.f32.mxu0 0.0
      %1438 = vmatmul.mubr.f32.gmra.mrb[0].mxu0 %v1353
      %v1439 = vpop.f32.mrb[0].mxu0
      %v1440 = vadd.f32 0.0, %v1439
      %v1441 = vpop.f32.mrb[0].mxu0
      %v1442 = vadd.f32 0.0, %v1441
      %1443 = vmatprep.mubr.f32.mxu0 0.0
      %1444 = vmatmul.mubr.f32.gmra.mrb[0].mxu0 %v1356
      %v1445 = vpop.f32.mrb[0].mxu0
      %v1446 = vadd.f32 0.0, %v1445
      %v1447 = vpop.f32.mrb[0].mxu0
      %v1448 = vadd.f32 0.0, %v1447
      %1449 = vmatprep.mubr.f32.mxu0 0.0
      %1450 = vmatmul.mubr.f32.gmra.mrb[0].mxu0 %v1359
      %v1451 = vpop.f32.mrb[0].mxu0
      %v1452 = vadd.f32 0.0, %v1451
      %v1453 = vpop.f32.mrb[0].mxu0
      %v1454 = vadd.f32 0.0, %v1453
      %1455 = vdwg.mxu0
      %1456 = vmatprep.subr.mxu0 0.0
      %1457 = vmatpush1.msra.mxu0 %v1365
      %1458 = vmatprep.subr.mxu0 0.0
      %1459 = vmatpush1.msra.mxu0 0.0
      %1460 = vmatprep.subr.mxu0 0.0
      %1461 = vmatpush1.msra.mxu0 0.0
      %1462 = vmatprep.subr.mxu0 0.0
      %1463 = vmatpush1.msra.mxu0 0.0
      %1464 = vmatprep.subr.mxu0 0.0
      %1465 = vmatpush1.msra.mxu0 0.0
      %1466 = vmatprep.subr.mxu0 0.0
      %1467 = vmatpush1.msra.mxu0 0.0
      %1468 = vmatprep.subr.mxu0 0.0
      %1469 = vmatpush1.msra.mxu0 0.0
      %1470 = vmatprep.subr.mxu0 0.0
      %1471 = vmatpush1.msra.mxu0 0.0
      %1472 = vmatprep.subr.mxu0 0.0
      %1473 = vmatpush1.msra.mxu0 0.0
      %1474 = vmatprep.subr.mxu0 0.0
      %1475 = vmatpush1.msra.mxu0 0.0
      %1476 = vmatprep.subr.mxu0 0.0
      %1477 = vmatpush1.msra.mxu0 0.0
      %1478 = vmatprep.subr.mxu0 0.0
      %1479 = vmatpush1.msra.mxu0 0.0
      %1480 = vmatprep.subr.mxu0 0.0
      %1481 = vmatpush1.msra.mxu0 0.0
      %1482 = vmatprep.subr.mxu0 0.0
      %1483 = vmatpush1.msra.mxu0 0.0
      %1484 = vmatprep.subr.mxu0 0.0
      %1485 = vmatpush1.msra.mxu0 0.0
      %1486 = vmatprep.subr.mxu0 0.0
      %1487 = vmatpush1.msra.mxu0 0.0
      %1488 = vmatprep.subr.mxu0 0.0
      %1489 = vmatpush1.msra.mxu0 0.0
      %1490 = vmatprep.subr.mxu0 0.0
      %1491 = vmatpush1.msra.mxu0 0.0
      %1492 = vmatprep.subr.mxu0 0.0
      %1493 = vmatpush1.msra.mxu0 0.0
      %1494 = vmatprep.subr.mxu0 0.0
      %1495 = vmatpush1.msra.mxu0 0.0
      %1496 = vmatprep.subr.mxu0 0.0
      %1497 = vmatpush1.msra.mxu0 0.0
      %1498 = vmatprep.subr.mxu0 0.0
      %1499 = vmatpush1.msra.mxu0 0.0
      %1500 = vmatprep.subr.mxu0 0.0
      %1501 = vmatpush1.msra.mxu0 0.0
      %1502 = vmatprep.subr.mxu0 0.0
      %1503 = vmatpush1.msra.mxu0 0.0
      %1504 = vmatprep.subr.mxu0 0.0
      %1505 = vmatpush1.msra.mxu0 0.0
      %1506 = vmatprep.subr.mxu0 0.0
      %1507 = vmatpush1.msra.mxu0 0.0
      %1508 = vmatprep.subr.mxu0 0.0
      %1509 = vmatpush1.msra.mxu0 0.0
      %1510 = vmatprep.subr.mxu0 0.0
      %1511 = vmatpush1.msra.mxu0 0.0
      %1512 = vmatprep.subr.mxu0 0.0
      %1513 = vmatpush1.msra.mxu0 0.0
      %1514 = vmatprep.subr.mxu0 0.0
      %1515 = vmatpush1.msra.mxu0 0.0
      %1516 = vmatprep.subr.mxu0 0.0
      %1517 = vmatpush1.msra.mxu0 0.0
      %1518 = vmatprep.subr.mxu0 0.0
      %1519 = vmatpush1.msra.mxu0 0.0
      %1520 = vmatprep.mubr.f32.mxu0 0.0
      %1521 = vmatmul.mubr.f32.gmra.mrb[0].mxu0 %v1350
      %v1522 = vpop.f32.mrb[0].mxu0
      %v1523 = vadd.f32 0.0, %v1522
      %v1524 = vpop.f32.mrb[0].mxu0
      %1525 = vmatprep.mubr.f32.mxu0 0.0
      %1526 = vmatmul.mubr.f32.gmra.mrb[0].mxu0 %v1353
      %v1527 = vpop.f32.mrb[0].mxu0
      %v1528 = vadd.f32 0.0, %v1527
      %v1529 = vpop.f32.mrb[0].mxu0
      %1530 = vmatprep.mubr.f32.mxu0 0.0
      %1531 = vmatmul.mubr.f32.gmra.mrb[0].mxu0 %v1356
      %v1532 = vpop.f32.mrb[0].mxu0
      %v1533 = vadd.f32 0.0, %v1532
      %v1534 = vpop.f32.mrb[0].mxu0
      %1535 = vmatprep.mubr.f32.mxu0 0.0
      %1536 = vmatmul.mubr.f32.gmra.mrb[0].mxu0 %v1359
      %v1537 = vpop.f32.mrb[0].mxu0
      %v1538 = vadd.f32 0.0, %v1537
      %v1539 = vpop.f32.mrb[0].mxu0
      %1540 = vdwg.mxu0
      %v1541 = vadd.f32 %v1318, %v1434
      %v1542 = vadd.f32 %v1319, %v1436
      %v1543 = vadd.f32 %v1320, %v1523
      %v1544 = vadd.f32 %v1321, %v1440
      %v1545 = vadd.f32 %v1322, %v1442
      %v1546 = vadd.f32 %v1323, %v1528
      %v1547 = vadd.f32 %v1324, %v1446
      %v1548 = vadd.f32 %v1325, %v1448
      %v1549 = vadd.f32 %v1326, %v1533
      %v1550 = vadd.f32 %v1327, %v1452
      %v1551 = vadd.f32 %v1328, %v1454
      %v1552 = vadd.f32 %v1329, %v1538
      %v1553 = vld [vmem:[%s246] sm:$0x77]
      %v1554 = vld [vmem:[%s246 + $0x8] sm:$0x7]
      %s1555 = scalar_lea.vmem %s1, 192
      %v1556 = vld [vmem:[%s1555] sm:$0xff]
      %v1557 = vld [vmem:[%s1555 + $0x8] sm:$0xff]
      %v1558 = vld [vmem:[%s1555 + $0x10] sm:$0xff]
      %v1559 = vld [vmem:[%s1555 + $0x18] sm:$0xff]
      %v1562 = vcombine.high %v1553, %v1553
      %1563 = vrot.lane.b32.xlu0 %v1553, 92
      %v1564 = vpop.permute.xlu0 %1563
      %1565 = vrot.lane.b32.xlu0 %v1562, 92
      %v1566 = vpop.permute.xlu0 %1565
      %1567 = vrot.lane.b32.xlu0 %v1554, 92
      %v1568 = vpop.permute.xlu0 %1567
      %vm1569 = vcmask 752640
      %v1570 = vsel %vm1569, %v1564, %v1566
      %v1571 = vsel %vm1569, %v1566, %v1568
      %v1573 = vsel %vm275, %v1556, 0
      %v1576 = vsel %vm275, %v1557, 0
      %v1579 = vsel %vm275, %v1558, 0
      %v1582 = vsel %vm275, %v1559, 0
      %v1584 = vsel %vm288, %v1570, 0
      %v1586 = vsel %vm288, %v1571, 0
      %v1588 = vsel %vm288, %v1568, 0
      %1590 = vmatprep.subr.mxu0 %v1586
      %1591 = vmatpush1.msra.mxu0 %v1584
      %1592 = vmatprep.subr.mxu0 0.0
      %1593 = vmatpush1.msra.mxu0 0.0
      %1594 = vmatprep.subr.mxu0 0.0
      %1595 = vmatpush1.msra.mxu0 0.0
      %1596 = vmatprep.subr.mxu0 0.0
      %1597 = vmatpush1.msra.mxu0 0.0
      %1598 = vmatprep.subr.mxu0 0.0
      %1599 = vmatpush1.msra.mxu0 0.0
      %1600 = vmatprep.subr.mxu0 0.0
      %1601 = vmatpush1.msra.mxu0 0.0
      %1602 = vmatprep.subr.mxu0 0.0
      %1603 = vmatpush1.msra.mxu0 0.0
      %1604 = vmatprep.subr.mxu0 0.0
      %1605 = vmatpush1.msra.mxu0 0.0
      %1606 = vmatprep.subr.mxu0 0.0
      %1607 = vmatpush1.msra.mxu0 0.0
      %1608 = vmatprep.subr.mxu0 0.0
      %1609 = vmatpush1.msra.mxu0 0.0
      %1610 = vmatprep.subr.mxu0 0.0
      %1611 = vmatpush1.msra.mxu0 0.0
      %1612 = vmatprep.subr.mxu0 0.0
      %1613 = vmatpush1.msra.mxu0 0.0
      %1614 = vmatprep.subr.mxu0 0.0
      %1615 = vmatpush1.msra.mxu0 0.0
      %1616 = vmatprep.subr.mxu0 0.0
      %1617 = vmatpush1.msra.mxu0 0.0
      %1618 = vmatprep.subr.mxu0 0.0
      %1619 = vmatpush1.msra.mxu0 0.0
      %1620 = vmatprep.subr.mxu0 0.0
      %1621 = vmatpush1.msra.mxu0 0.0
      %1622 = vmatprep.subr.mxu0 0.0
      %1623 = vmatpush1.msra.mxu0 0.0
      %1624 = vmatprep.subr.mxu0 0.0
      %1625 = vmatpush1.msra.mxu0 0.0
      %1626 = vmatprep.subr.mxu0 0.0
      %1627 = vmatpush1.msra.mxu0 0.0
      %1628 = vmatprep.subr.mxu0 0.0
      %1629 = vmatpush1.msra.mxu0 0.0
      %1630 = vmatprep.subr.mxu0 0.0
      %1631 = vmatpush1.msra.mxu0 0.0
      %1632 = vmatprep.subr.mxu0 0.0
      %1633 = vmatpush1.msra.mxu0 0.0
      %1634 = vmatprep.subr.mxu0 0.0
      %1635 = vmatpush1.msra.mxu0 0.0
      %1636 = vmatprep.subr.mxu0 0.0
      %1637 = vmatpush1.msra.mxu0 0.0
      %1638 = vmatprep.subr.mxu0 0.0
      %1639 = vmatpush1.msra.mxu0 0.0
      %1640 = vmatprep.subr.mxu0 0.0
      %1641 = vmatpush1.msra.mxu0 0.0
      %1642 = vmatprep.subr.mxu0 0.0
      %1643 = vmatpush1.msra.mxu0 0.0
      %1644 = vmatprep.subr.mxu0 0.0
      %1645 = vmatpush1.msra.mxu0 0.0
      %1646 = vmatprep.subr.mxu0 0.0
      %1647 = vmatpush1.msra.mxu0 0.0
      %1648 = vmatprep.subr.mxu0 0.0
      %1649 = vmatpush1.msra.mxu0 0.0
      %1650 = vmatprep.subr.mxu0 0.0
      %1651 = vmatpush1.msra.mxu0 0.0
      %1652 = vmatprep.subr.mxu0 0.0
      %1653 = vmatpush1.msra.mxu0 0.0
      %1654 = vmatprep.mubr.f32.mxu0 0.0
      %1655 = vmatmul.mubr.f32.gmra.mrb[0].mxu0 %v1573
      %v1656 = vpop.f32.mrb[0].mxu0
      %v1657 = vadd.f32 0.0, %v1656
      %v1658 = vpop.f32.mrb[0].mxu0
      %v1659 = vadd.f32 0.0, %v1658
      %1660 = vmatprep.mubr.f32.mxu0 0.0
      %1661 = vmatmul.mubr.f32.gmra.mrb[0].mxu0 %v1576
      %v1662 = vpop.f32.mrb[0].mxu0
      %v1663 = vadd.f32 0.0, %v1662
      %v1664 = vpop.f32.mrb[0].mxu0
      %v1665 = vadd.f32 0.0, %v1664
      %1666 = vmatprep.mubr.f32.mxu0 0.0
      %1667 = vmatmul.mubr.f32.gmra.mrb[0].mxu0 %v1579
      %v1668 = vpop.f32.mrb[0].mxu0
      %v1669 = vadd.f32 0.0, %v1668
      %v1670 = vpop.f32.mrb[0].mxu0
      %v1671 = vadd.f32 0.0, %v1670
      %1672 = vmatprep.mubr.f32.mxu0 0.0
      %1673 = vmatmul.mubr.f32.gmra.mrb[0].mxu0 %v1582
      %v1674 = vpop.f32.mrb[0].mxu0
      %v1675 = vadd.f32 0.0, %v1674
      %v1676 = vpop.f32.mrb[0].mxu0
      %v1677 = vadd.f32 0.0, %v1676
      %1678 = vdwg.mxu0
      %1679 = vmatprep.subr.mxu0 0.0
      %1680 = vmatpush1.msra.mxu0 %v1588
      %1681 = vmatprep.subr.mxu0 0.0
      %1682 = vmatpush1.msra.mxu0 0.0
      %1683 = vmatprep.subr.mxu0 0.0
      %1684 = vmatpush1.msra.mxu0 0.0
      %1685 = vmatprep.subr.mxu0 0.0
      %1686 = vmatpush1.msra.mxu0 0.0
      %1687 = vmatprep.subr.mxu0 0.0
      %1688 = vmatpush1.msra.mxu0 0.0
      %1689 = vmatprep.subr.mxu0 0.0
      %1690 = vmatpush1.msra.mxu0 0.0
      %1691 = vmatprep.subr.mxu0 0.0
      %1692 = vmatpush1.msra.mxu0 0.0
      %1693 = vmatprep.subr.mxu0 0.0
      %1694 = vmatpush1.msra.mxu0 0.0
      %1695 = vmatprep.subr.mxu0 0.0
      %1696 = vmatpush1.msra.mxu0 0.0
      %1697 = vmatprep.subr.mxu0 0.0
      %1698 = vmatpush1.msra.mxu0 0.0
      %1699 = vmatprep.subr.mxu0 0.0
      %1700 = vmatpush1.msra.mxu0 0.0
      %1701 = vmatprep.subr.mxu0 0.0
      %1702 = vmatpush1.msra.mxu0 0.0
      %1703 = vmatprep.subr.mxu0 0.0
      %1704 = vmatpush1.msra.mxu0 0.0
      %1705 = vmatprep.subr.mxu0 0.0
      %1706 = vmatpush1.msra.mxu0 0.0
      %1707 = vmatprep.subr.mxu0 0.0
      %1708 = vmatpush1.msra.mxu0 0.0
      %1709 = vmatprep.subr.mxu0 0.0
      %1710 = vmatpush1.msra.mxu0 0.0
      %1711 = vmatprep.subr.mxu0 0.0
      %1712 = vmatpush1.msra.mxu0 0.0
      %1713 = vmatprep.subr.mxu0 0.0
      %1714 = vmatpush1.msra.mxu0 0.0
      %1715 = vmatprep.subr.mxu0 0.0
      %1716 = vmatpush1.msra.mxu0 0.0
      %1717 = vmatprep.subr.mxu0 0.0
      %1718 = vmatpush1.msra.mxu0 0.0
      %1719 = vmatprep.subr.mxu0 0.0
      %1720 = vmatpush1.msra.mxu0 0.0
      %1721 = vmatprep.subr.mxu0 0.0
      %1722 = vmatpush1.msra.mxu0 0.0
      %1723 = vmatprep.subr.mxu0 0.0
      %1724 = vmatpush1.msra.mxu0 0.0
      %1725 = vmatprep.subr.mxu0 0.0
      %1726 = vmatpush1.msra.mxu0 0.0
      %1727 = vmatprep.subr.mxu0 0.0
      %1728 = vmatpush1.msra.mxu0 0.0
      %1729 = vmatprep.subr.mxu0 0.0
      %1730 = vmatpush1.msra.mxu0 0.0
      %1731 = vmatprep.subr.mxu0 0.0
      %1732 = vmatpush1.msra.mxu0 0.0
      %1733 = vmatprep.subr.mxu0 0.0
      %1734 = vmatpush1.msra.mxu0 0.0
      %1735 = vmatprep.subr.mxu0 0.0
      %1736 = vmatpush1.msra.mxu0 0.0
      %1737 = vmatprep.subr.mxu0 0.0
      %1738 = vmatpush1.msra.mxu0 0.0
      %1739 = vmatprep.subr.mxu0 0.0
      %1740 = vmatpush1.msra.mxu0 0.0
      %1741 = vmatprep.subr.mxu0 0.0
      %1742 = vmatpush1.msra.mxu0 0.0
      %1743 = vmatprep.mubr.f32.mxu0 0.0
      %1744 = vmatmul.mubr.f32.gmra.mrb[0].mxu0 %v1573
      %v1745 = vpop.f32.mrb[0].mxu0
      %v1746 = vadd.f32 0.0, %v1745
      %v1747 = vpop.f32.mrb[0].mxu0
      %1748 = vmatprep.mubr.f32.mxu0 0.0
      %1749 = vmatmul.mubr.f32.gmra.mrb[0].mxu0 %v1576
      %v1750 = vpop.f32.mrb[0].mxu0
      %v1751 = vadd.f32 0.0, %v1750
      %v1752 = vpop.f32.mrb[0].mxu0
      %1753 = vmatprep.mubr.f32.mxu0 0.0
      %1754 = vmatmul.mubr.f32.gmra.mrb[0].mxu0 %v1579
      %v1755 = vpop.f32.mrb[0].mxu0
      %v1756 = vadd.f32 0.0, %v1755
      %v1757 = vpop.f32.mrb[0].mxu0
      %1758 = vmatprep.mubr.f32.mxu0 0.0
      %1759 = vmatmul.mubr.f32.gmra.mrb[0].mxu0 %v1582
      %v1760 = vpop.f32.mrb[0].mxu0
      %v1761 = vadd.f32 0.0, %v1760
      %v1762 = vpop.f32.mrb[0].mxu0
      %1763 = vdwg.mxu0
      %v1764 = vadd.f32 %v1541, %v1657
      %v1765 = vadd.f32 %v1542, %v1659
      %v1766 = vadd.f32 %v1543, %v1746
      %v1767 = vadd.f32 %v1544, %v1663
      %v1768 = vadd.f32 %v1545, %v1665
      %v1769 = vadd.f32 %v1546, %v1751
      %v1770 = vadd.f32 %v1547, %v1669
      %v1771 = vadd.f32 %v1548, %v1671
      %v1772 = vadd.f32 %v1549, %v1756
      %v1773 = vadd.f32 %v1550, %v1675
      %v1774 = vadd.f32 %v1551, %v1677
      %v1775 = vadd.f32 %v1552, %v1761
      %v1776 = vld [vmem:[%s246] sm:$0x77]
      %v1777 = vld [vmem:[%s246 + $0x8] sm:$0x7]
      %s1778 = scalar_lea.vmem %s1, 224
      %v1779 = vld [vmem:[%s1778] sm:$0xff]
      %v1780 = vld [vmem:[%s1778 + $0x8] sm:$0xff]
      %v1781 = vld [vmem:[%s1778 + $0x10] sm:$0xff]
      %v1782 = vld [vmem:[%s1778 + $0x18] sm:$0xff]
      %v1785 = vcombine.high %v1776, %v1776
      %1786 = vrot.lane.b32.xlu0 %v1776, 91
      %v1787 = vpop.permute.xlu0 %1786
      %1788 = vrot.lane.b32.xlu0 %v1785, 91
      %v1789 = vpop.permute.xlu0 %1788
      %1790 = vrot.lane.b32.xlu0 %v1777, 91
      %v1791 = vpop.permute.xlu0 %1790
      %vm1792 = vcmask 744448
      %v1793 = vsel %vm1792, %v1787, %v1789
      %v1794 = vsel %vm1792, %v1789, %v1791
      %v1796 = vsel %vm275, %v1779, 0
      %v1799 = vsel %vm275, %v1780, 0
      %v1802 = vsel %vm275, %v1781, 0
      %v1805 = vsel %vm275, %v1782, 0
      %v1807 = vsel %vm288, %v1793, 0
      %v1809 = vsel %vm288, %v1794, 0
      %v1811 = vsel %vm288, %v1791, 0
      %1813 = vmatprep.subr.mxu0 %v1809
      %1814 = vmatpush1.msra.mxu0 %v1807
      %1815 = vmatprep.subr.mxu0 0.0
      %1816 = vmatpush1.msra.mxu0 0.0
      %1817 = vmatprep.subr.mxu0 0.0
      %1818 = vmatpush1.msra.mxu0 0.0
      %1819 = vmatprep.subr.mxu0 0.0
      %1820 = vmatpush1.msra.mxu0 0.0
      %1821 = vmatprep.subr.mxu0 0.0
      %1822 = vmatpush1.msra.mxu0 0.0
      %1823 = vmatprep.subr.mxu0 0.0
      %1824 = vmatpush1.msra.mxu0 0.0
      %1825 = vmatprep.subr.mxu0 0.0
      %1826 = vmatpush1.msra.mxu0 0.0
      %1827 = vmatprep.subr.mxu0 0.0
      %1828 = vmatpush1.msra.mxu0 0.0
      %1829 = vmatprep.subr.mxu0 0.0
      %1830 = vmatpush1.msra.mxu0 0.0
      %1831 = vmatprep.subr.mxu0 0.0
      %1832 = vmatpush1.msra.mxu0 0.0
      %1833 = vmatprep.subr.mxu0 0.0
      %1834 = vmatpush1.msra.mxu0 0.0
      %1835 = vmatprep.subr.mxu0 0.0
      %1836 = vmatpush1.msra.mxu0 0.0
      %1837 = vmatprep.subr.mxu0 0.0
      %1838 = vmatpush1.msra.mxu0 0.0
      %1839 = vmatprep.subr.mxu0 0.0
      %1840 = vmatpush1.msra.mxu0 0.0
      %1841 = vmatprep.subr.mxu0 0.0
      %1842 = vmatpush1.msra.mxu0 0.0
      %1843 = vmatprep.subr.mxu0 0.0
      %1844 = vmatpush1.msra.mxu0 0.0
      %1845 = vmatprep.subr.mxu0 0.0
      %1846 = vmatpush1.msra.mxu0 0.0
      %1847 = vmatprep.subr.mxu0 0.0
      %1848 = vmatpush1.msra.mxu0 0.0
      %1849 = vmatprep.subr.mxu0 0.0
      %1850 = vmatpush1.msra.mxu0 0.0
      %1851 = vmatprep.subr.mxu0 0.0
      %1852 = vmatpush1.msra.mxu0 0.0
      %1853 = vmatprep.subr.mxu0 0.0
      %1854 = vmatpush1.msra.mxu0 0.0
      %1855 = vmatprep.subr.mxu0 0.0
      %1856 = vmatpush1.msra.mxu0 0.0
      %1857 = vmatprep.subr.mxu0 0.0
      %1858 = vmatpush1.msra.mxu0 0.0
      %1859 = vmatprep.subr.mxu0 0.0
      %1860 = vmatpush1.msra.mxu0 0.0
      %1861 = vmatprep.subr.mxu0 0.0
      %1862 = vmatpush1.msra.mxu0 0.0
      %1863 = vmatprep.subr.mxu0 0.0
      %1864 = vmatpush1.msra.mxu0 0.0
      %1865 = vmatprep.subr.mxu0 0.0
      %1866 = vmatpush1.msra.mxu0 0.0
      %1867 = vmatprep.subr.mxu0 0.0
      %1868 = vmatpush1.msra.mxu0 0.0
      %1869 = vmatprep.subr.mxu0 0.0
      %1870 = vmatpush1.msra.mxu0 0.0
      %1871 = vmatprep.subr.mxu0 0.0
      %1872 = vmatpush1.msra.mxu0 0.0
      %1873 = vmatprep.subr.mxu0 0.0
      %1874 = vmatpush1.msra.mxu0 0.0
      %1875 = vmatprep.subr.mxu0 0.0
      %1876 = vmatpush1.msra.mxu0 0.0
      %1877 = vmatprep.mubr.f32.mxu0 0.0
      %1878 = vmatmul.mubr.f32.gmra.mrb[0].mxu0 %v1796
      %v1879 = vpop.f32.mrb[0].mxu0
      %v1880 = vadd.f32 0.0, %v1879
      %v1881 = vpop.f32.mrb[0].mxu0
      %v1882 = vadd.f32 0.0, %v1881
      %1883 = vmatprep.mubr.f32.mxu0 0.0
      %1884 = vmatmul.mubr.f32.gmra.mrb[0].mxu0 %v1799
      %v1885 = vpop.f32.mrb[0].mxu0
      %v1886 = vadd.f32 0.0, %v1885
      %v1887 = vpop.f32.mrb[0].mxu0
      %v1888 = vadd.f32 0.0, %v1887
      %1889 = vmatprep.mubr.f32.mxu0 0.0
      %1890 = vmatmul.mubr.f32.gmra.mrb[0].mxu0 %v1802
      %v1891 = vpop.f32.mrb[0].mxu0
      %v1892 = vadd.f32 0.0, %v1891
      %v1893 = vpop.f32.mrb[0].mxu0
      %v1894 = vadd.f32 0.0, %v1893
      %1895 = vmatprep.mubr.f32.mxu0 0.0
      %1896 = vmatmul.mubr.f32.gmra.mrb[0].mxu0 %v1805
      %v1897 = vpop.f32.mrb[0].mxu0
      %v1898 = vadd.f32 0.0, %v1897
      %v1899 = vpop.f32.mrb[0].mxu0
      %v1900 = vadd.f32 0.0, %v1899
      %1901 = vdwg.mxu0
      %1902 = vmatprep.subr.mxu0 0.0
      %1903 = vmatpush1.msra.mxu0 %v1811
      %1904 = vmatprep.subr.mxu0 0.0
      %1905 = vmatpush1.msra.mxu0 0.0
      %1906 = vmatprep.subr.mxu0 0.0
      %1907 = vmatpush1.msra.mxu0 0.0
      %1908 = vmatprep.subr.mxu0 0.0
      %1909 = vmatpush1.msra.mxu0 0.0
      %1910 = vmatprep.subr.mxu0 0.0
      %1911 = vmatpush1.msra.mxu0 0.0
      %1912 = vmatprep.subr.mxu0 0.0
      %1913 = vmatpush1.msra.mxu0 0.0
      %1914 = vmatprep.subr.mxu0 0.0
      %1915 = vmatpush1.msra.mxu0 0.0
      %1916 = vmatprep.subr.mxu0 0.0
      %1917 = vmatpush1.msra.mxu0 0.0
      %1918 = vmatprep.subr.mxu0 0.0
      %1919 = vmatpush1.msra.mxu0 0.0
      %1920 = vmatprep.subr.mxu0 0.0
      %1921 = vmatpush1.msra.mxu0 0.0
      %1922 = vmatprep.subr.mxu0 0.0
      %1923 = vmatpush1.msra.mxu0 0.0
      %1924 = vmatprep.subr.mxu0 0.0
      %1925 = vmatpush1.msra.mxu0 0.0
      %1926 = vmatprep.subr.mxu0 0.0
      %1927 = vmatpush1.msra.mxu0 0.0
      %1928 = vmatprep.subr.mxu0 0.0
      %1929 = vmatpush1.msra.mxu0 0.0
      %1930 = vmatprep.subr.mxu0 0.0
      %1931 = vmatpush1.msra.mxu0 0.0
      %1932 = vmatprep.subr.mxu0 0.0
      %1933 = vmatpush1.msra.mxu0 0.0
      %1934 = vmatprep.subr.mxu0 0.0
      %1935 = vmatpush1.msra.mxu0 0.0
      %1936 = vmatprep.subr.mxu0 0.0
      %1937 = vmatpush1.msra.mxu0 0.0
      %1938 = vmatprep.subr.mxu0 0.0
      %1939 = vmatpush1.msra.mxu0 0.0
      %1940 = vmatprep.subr.mxu0 0.0
      %1941 = vmatpush1.msra.mxu0 0.0
      %1942 = vmatprep.subr.mxu0 0.0
      %1943 = vmatpush1.msra.mxu0 0.0
      %1944 = vmatprep.subr.mxu0 0.0
      %1945 = vmatpush1.msra.mxu0 0.0
      %1946 = vmatprep.subr.mxu0 0.0
      %1947 = vmatpush1.msra.mxu0 0.0
      %1948 = vmatprep.subr.mxu0 0.0
      %1949 = vmatpush1.msra.mxu0 0.0
      %1950 = vmatprep.subr.mxu0 0.0
      %1951 = vmatpush1.msra.mxu0 0.0
      %1952 = vmatprep.subr.mxu0 0.0
      %1953 = vmatpush1.msra.mxu0 0.0
      %1954 = vmatprep.subr.mxu0 0.0
      %1955 = vmatpush1.msra.mxu0 0.0
      %1956 = vmatprep.subr.mxu0 0.0
      %1957 = vmatpush1.msra.mxu0 0.0
      %1958 = vmatprep.subr.mxu0 0.0
      %1959 = vmatpush1.msra.mxu0 0.0
      %1960 = vmatprep.subr.mxu0 0.0
      %1961 = vmatpush1.msra.mxu0 0.0
      %1962 = vmatprep.subr.mxu0 0.0
      %1963 = vmatpush1.msra.mxu0 0.0
      %1964 = vmatprep.subr.mxu0 0.0
      %1965 = vmatpush1.msra.mxu0 0.0
      %1966 = vmatprep.mubr.f32.mxu0 0.0
      %1967 = vmatmul.mubr.f32.gmra.mrb[0].mxu0 %v1796
      %v1968 = vpop.f32.mrb[0].mxu0
      %v1969 = vadd.f32 0.0, %v1968
      %v1970 = vpop.f32.mrb[0].mxu0
      %1971 = vmatprep.mubr.f32.mxu0 0.0
      %1972 = vmatmul.mubr.f32.gmra.mrb[0].mxu0 %v1799
      %v1973 = vpop.f32.mrb[0].mxu0
      %v1974 = vadd.f32 0.0, %v1973
      %v1975 = vpop.f32.mrb[0].mxu0
      %1976 = vmatprep.mubr.f32.mxu0 0.0
      %1977 = vmatmul.mubr.f32.gmra.mrb[0].mxu0 %v1802
      %v1978 = vpop.f32.mrb[0].mxu0
      %v1979 = vadd.f32 0.0, %v1978
      %v1980 = vpop.f32.mrb[0].mxu0
      %1981 = vmatprep.mubr.f32.mxu0 0.0
      %1982 = vmatmul.mubr.f32.gmra.mrb[0].mxu0 %v1805
      %v1983 = vpop.f32.mrb[0].mxu0
      %v1984 = vadd.f32 0.0, %v1983
      %v1985 = vpop.f32.mrb[0].mxu0
      %1986 = vdwg.mxu0
      %v1987 = vadd.f32 %v1764, %v1880
      %v1988 = vadd.f32 %v1765, %v1882
      %v1989 = vadd.f32 %v1766, %v1969
      %v1990 = vadd.f32 %v1767, %v1886
      %v1991 = vadd.f32 %v1768, %v1888
      %v1992 = vadd.f32 %v1769, %v1974
      %v1993 = vadd.f32 %v1770, %v1892
      %v1994 = vadd.f32 %v1771, %v1894
      %v1995 = vadd.f32 %v1772, %v1979
      %v1996 = vadd.f32 %v1773, %v1898
      %v1997 = vadd.f32 %v1774, %v1900
      %v1998 = vadd.f32 %v1775, %v1984
      %v1999 = vld [vmem:[%s246] sm:$0x77]
      %v2000 = vld [vmem:[%s246 + $0x8] sm:$0x7]
      %s2001 = scalar_lea.vmem %s1, 256
      %v2002 = vld [vmem:[%s2001] sm:$0xff]
      %v2003 = vld [vmem:[%s2001 + $0x8] sm:$0xff]
      %v2004 = vld [vmem:[%s2001 + $0x10] sm:$0xff]
      %v2005 = vld [vmem:[%s2001 + $0x18] sm:$0xff]
      %v2008 = vcombine.high %v1999, %v1999
      %2009 = vrot.lane.b32.xlu0 %v1999, 90
      %v2010 = vpop.permute.xlu0 %2009
      %2011 = vrot.lane.b32.xlu0 %v2008, 90
      %v2012 = vpop.permute.xlu0 %2011
      %2013 = vrot.lane.b32.xlu0 %v2000, 90
      %v2014 = vpop.permute.xlu0 %2013
      %vm2015 = vcmask 736256
      %v2016 = vsel %vm2015, %v2010, %v2012
      %v2017 = vsel %vm2015, %v2012, %v2014
      %v2019 = vsel %vm275, %v2002, 0
      %v2022 = vsel %vm275, %v2003, 0
      %v2025 = vsel %vm275, %v2004, 0
      %v2028 = vsel %vm275, %v2005, 0
      %v2030 = vsel %vm288, %v2016, 0
      %v2032 = vsel %vm288, %v2017, 0
      %v2034 = vsel %vm288, %v2014, 0
      %2036 = vmatprep.subr.mxu0 %v2032
      %2037 = vmatpush1.msra.mxu0 %v2030
      %2038 = vmatprep.subr.mxu0 0.0
      %2039 = vmatpush1.msra.mxu0 0.0
      %2040 = vmatprep.subr.mxu0 0.0
      %2041 = vmatpush1.msra.mxu0 0.0
      %2042 = vmatprep.subr.mxu0 0.0
      %2043 = vmatpush1.msra.mxu0 0.0
      %2044 = vmatprep.subr.mxu0 0.0
      %2045 = vmatpush1.msra.mxu0 0.0
      %2046 = vmatprep.subr.mxu0 0.0
      %2047 = vmatpush1.msra.mxu0 0.0
      %2048 = vmatprep.subr.mxu0 0.0
      %2049 = vmatpush1.msra.mxu0 0.0
      %2050 = vmatprep.subr.mxu0 0.0
      %2051 = vmatpush1.msra.mxu0 0.0
      %2052 = vmatprep.subr.mxu0 0.0
      %2053 = vmatpush1.msra.mxu0 0.0
      %2054 = vmatprep.subr.mxu0 0.0
      %2055 = vmatpush1.msra.mxu0 0.0
      %2056 = vmatprep.subr.mxu0 0.0
      %2057 = vmatpush1.msra.mxu0 0.0
      %2058 = vmatprep.subr.mxu0 0.0
      %2059 = vmatpush1.msra.mxu0 0.0
      %2060 = vmatprep.subr.mxu0 0.0
      %2061 = vmatpush1.msra.mxu0 0.0
      %2062 = vmatprep.subr.mxu0 0.0
      %2063 = vmatpush1.msra.mxu0 0.0
      %2064 = vmatprep.subr.mxu0 0.0
      %2065 = vmatpush1.msra.mxu0 0.0
      %2066 = vmatprep.subr.mxu0 0.0
      %2067 = vmatpush1.msra.mxu0 0.0
      %2068 = vmatprep.subr.mxu0 0.0
      %2069 = vmatpush1.msra.mxu0 0.0
      %2070 = vmatprep.subr.mxu0 0.0
      %2071 = vmatpush1.msra.mxu0 0.0
      %2072 = vmatprep.subr.mxu0 0.0
      %2073 = vmatpush1.msra.mxu0 0.0
      %2074 = vmatprep.subr.mxu0 0.0
      %2075 = vmatpush1.msra.mxu0 0.0
      %2076 = vmatprep.subr.mxu0 0.0
      %2077 = vmatpush1.msra.mxu0 0.0
      %2078 = vmatprep.subr.mxu0 0.0
      %2079 = vmatpush1.msra.mxu0 0.0
      %2080 = vmatprep.subr.mxu0 0.0
      %2081 = vmatpush1.msra.mxu0 0.0
      %2082 = vmatprep.subr.mxu0 0.0
      %2083 = vmatpush1.msra.mxu0 0.0
      %2084 = vmatprep.subr.mxu0 0.0
      %2085 = vmatpush1.msra.mxu0 0.0
      %2086 = vmatprep.subr.mxu0 0.0
      %2087 = vmatpush1.msra.mxu0 0.0
      %2088 = vmatprep.subr.mxu0 0.0
      %2089 = vmatpush1.msra.mxu0 0.0
      %2090 = vmatprep.subr.mxu0 0.0
      %2091 = vmatpush1.msra.mxu0 0.0
      %2092 = vmatprep.subr.mxu0 0.0
      %2093 = vmatpush1.msra.mxu0 0.0
      %2094 = vmatprep.subr.mxu0 0.0
      %2095 = vmatpush1.msra.mxu0 0.0
      %2096 = vmatprep.subr.mxu0 0.0
      %2097 = vmatpush1.msra.mxu0 0.0
      %2098 = vmatprep.subr.mxu0 0.0
      %2099 = vmatpush1.msra.mxu0 0.0
      %2100 = vmatprep.mubr.f32.mxu0 0.0
      %2101 = vmatmul.mubr.f32.gmra.mrb[0].mxu0 %v2019
      %v2102 = vpop.f32.mrb[0].mxu0
      %v2103 = vadd.f32 0.0, %v2102
      %v2104 = vpop.f32.mrb[0].mxu0
      %v2105 = vadd.f32 0.0, %v2104
      %2106 = vmatprep.mubr.f32.mxu0 0.0
      %2107 = vmatmul.mubr.f32.gmra.mrb[0].mxu0 %v2022
      %v2108 = vpop.f32.mrb[0].mxu0
      %v2109 = vadd.f32 0.0, %v2108
      %v2110 = vpop.f32.mrb[0].mxu0
      %v2111 = vadd.f32 0.0, %v2110
      %2112 = vmatprep.mubr.f32.mxu0 0.0
      %2113 = vmatmul.mubr.f32.gmra.mrb[0].mxu0 %v2025
      %v2114 = vpop.f32.mrb[0].mxu0
      %v2115 = vadd.f32 0.0, %v2114
      %v2116 = vpop.f32.mrb[0].mxu0
      %v2117 = vadd.f32 0.0, %v2116
      %2118 = vmatprep.mubr.f32.mxu0 0.0
      %2119 = vmatmul.mubr.f32.gmra.mrb[0].mxu0 %v2028
      %v2120 = vpop.f32.mrb[0].mxu0
      %v2121 = vadd.f32 0.0, %v2120
      %v2122 = vpop.f32.mrb[0].mxu0
      %v2123 = vadd.f32 0.0, %v2122
      %2124 = vdwg.mxu0
      %2125 = vmatprep.subr.mxu0 0.0
      %2126 = vmatpush1.msra.mxu0 %v2034
      %2127 = vmatprep.subr.mxu0 0.0
      %2128 = vmatpush1.msra.mxu0 0.0
      %2129 = vmatprep.subr.mxu0 0.0
      %2130 = vmatpush1.msra.mxu0 0.0
      %2131 = vmatprep.subr.mxu0 0.0
      %2132 = vmatpush1.msra.mxu0 0.0
      %2133 = vmatprep.subr.mxu0 0.0
      %2134 = vmatpush1.msra.mxu0 0.0
      %2135 = vmatprep.subr.mxu0 0.0
      %2136 = vmatpush1.msra.mxu0 0.0
      %2137 = vmatprep.subr.mxu0 0.0
      %2138 = vmatpush1.msra.mxu0 0.0
      %2139 = vmatprep.subr.mxu0 0.0
      %2140 = vmatpush1.msra.mxu0 0.0
      %2141 = vmatprep.subr.mxu0 0.0
      %2142 = vmatpush1.msra.mxu0 0.0
      %2143 = vmatprep.subr.mxu0 0.0
      %2144 = vmatpush1.msra.mxu0 0.0
      %2145 = vmatprep.subr.mxu0 0.0
      %2146 = vmatpush1.msra.mxu0 0.0
      %2147 = vmatprep.subr.mxu0 0.0
      %2148 = vmatpush1.msra.mxu0 0.0
      %2149 = vmatprep.subr.mxu0 0.0
      %2150 = vmatpush1.msra.mxu0 0.0
      %2151 = vmatprep.subr.mxu0 0.0
      %2152 = vmatpush1.msra.mxu0 0.0
      %2153 = vmatprep.subr.mxu0 0.0
      %2154 = vmatpush1.msra.mxu0 0.0
      %2155 = vmatprep.subr.mxu0 0.0
      %2156 = vmatpush1.msra.mxu0 0.0
      %2157 = vmatprep.subr.mxu0 0.0
      %2158 = vmatpush1.msra.mxu0 0.0
      %2159 = vmatprep.subr.mxu0 0.0
      %2160 = vmatpush1.msra.mxu0 0.0
      %2161 = vmatprep.subr.mxu0 0.0
      %2162 = vmatpush1.msra.mxu0 0.0
      %2163 = vmatprep.subr.mxu0 0.0
      %2164 = vmatpush1.msra.mxu0 0.0
      %2165 = vmatprep.subr.mxu0 0.0
      %2166 = vmatpush1.msra.mxu0 0.0
      %2167 = vmatprep.subr.mxu0 0.0
      %2168 = vmatpush1.msra.mxu0 0.0
      %2169 = vmatprep.subr.mxu0 0.0
      %2170 = vmatpush1.msra.mxu0 0.0
      %2171 = vmatprep.subr.mxu0 0.0
      %2172 = vmatpush1.msra.mxu0 0.0
      %2173 = vmatprep.subr.mxu0 0.0
      %2174 = vmatpush1.msra.mxu0 0.0
      %2175 = vmatprep.subr.mxu0 0.0
      %2176 = vmatpush1.msra.mxu0 0.0
      %2177 = vmatprep.subr.mxu0 0.0
      %2178 = vmatpush1.msra.mxu0 0.0
      %2179 = vmatprep.subr.mxu0 0.0
      %2180 = vmatpush1.msra.mxu0 0.0
      %2181 = vmatprep.subr.mxu0 0.0
      %2182 = vmatpush1.msra.mxu0 0.0
      %2183 = vmatprep.subr.mxu0 0.0
      %2184 = vmatpush1.msra.mxu0 0.0
      %2185 = vmatprep.subr.mxu0 0.0
      %2186 = vmatpush1.msra.mxu0 0.0
      %2187 = vmatprep.subr.mxu0 0.0
      %2188 = vmatpush1.msra.mxu0 0.0
      %2189 = vmatprep.mubr.f32.mxu0 0.0
      %2190 = vmatmul.mubr.f32.gmra.mrb[0].mxu0 %v2019
      %v2191 = vpop.f32.mrb[0].mxu0
      %v2192 = vadd.f32 0.0, %v2191
      %v2193 = vpop.f32.mrb[0].mxu0
      %2194 = vmatprep.mubr.f32.mxu0 0.0
      %2195 = vmatmul.mubr.f32.gmra.mrb[0].mxu0 %v2022
      %v2196 = vpop.f32.mrb[0].mxu0
      %v2197 = vadd.f32 0.0, %v2196
      %v2198 = vpop.f32.mrb[0].mxu0
      %2199 = vmatprep.mubr.f32.mxu0 0.0
      %2200 = vmatmul.mubr.f32.gmra.mrb[0].mxu0 %v2025
      %v2201 = vpop.f32.mrb[0].mxu0
      %v2202 = vadd.f32 0.0, %v2201
      %v2203 = vpop.f32.mrb[0].mxu0
      %2204 = vmatprep.mubr.f32.mxu0 0.0
      %2205 = vmatmul.mubr.f32.gmra.mrb[0].mxu0 %v2028
      %v2206 = vpop.f32.mrb[0].mxu0
      %v2207 = vadd.f32 0.0, %v2206
      %v2208 = vpop.f32.mrb[0].mxu0
      %2209 = vdwg.mxu0
      %v2210 = vadd.f32 %v1987, %v2103
      %v2211 = vadd.f32 %v1988, %v2105
      %v2212 = vadd.f32 %v1989, %v2192
      %v2213 = vadd.f32 %v1990, %v2109
      %v2214 = vadd.f32 %v1991, %v2111
      %v2215 = vadd.f32 %v1992, %v2197
      %v2216 = vadd.f32 %v1993, %v2115
      %v2217 = vadd.f32 %v1994, %v2117
      %v2218 = vadd.f32 %v1995, %v2202
      %v2219 = vadd.f32 %v1996, %v2121
      %v2220 = vadd.f32 %v1997, %v2123
      %v2221 = vadd.f32 %v1998, %v2207
      %v2222 = vld [vmem:[%s2] sm:$0xff]
      %v2223 = vld [vmem:[%s2 + $0x8] sm:$0xff]
      %v2224 = vld [vmem:[%s2 + $0x10] sm:$0xff]
      %v2225 = vld [vmem:[%s2 + $0x18] sm:$0xff]
      %2227 = vset.pattern.permute.xlu0 0
      %2228 = vperm.xlu0 %2227, %v2222
      %v2229 = vpop.permute.xlu0 %2228
      %2232 = vset.pattern.permute.xlu0 0
      %2233 = vperm.xlu0 %2232, %v2223
      %v2234 = vpop.permute.xlu0 %2233
      %2237 = vset.pattern.permute.xlu0 0
      %2238 = vperm.xlu0 %2237, %v2224
      %v2239 = vpop.permute.xlu0 %2238
      %2242 = vset.pattern.permute.xlu0 0
      %2243 = vperm.xlu0 %2242, %v2225
      %v2244 = vpop.permute.xlu0 %2243
      %v2246 = vadd.f32 %v2210, %v2229
      %v2247 = vadd.f32 %v2211, %v2229
      %v2248 = vadd.f32 %v2212, %v2229
      %v2249 = vadd.f32 %v2213, %v2234
      %v2250 = vadd.f32 %v2214, %v2234
      %v2251 = vadd.f32 %v2215, %v2234
      %v2252 = vadd.f32 %v2216, %v2239
      %v2253 = vadd.f32 %v2217, %v2239
      %v2254 = vadd.f32 %v2218, %v2239
      %v2255 = vadd.f32 %v2219, %v2244
      %v2256 = vadd.f32 %v2220, %v2244
      %v2257 = vadd.f32 %v2221, %v2244
      %v2258 = vmax.f32 %v2246, 0.0
      %v2259 = vmax.f32 %v2247, 0.0
      %v2260 = vmax.f32 %v2248, 0.0
      %v2261 = vmax.f32 %v2249, 0.0
      %v2262 = vmax.f32 %v2250, 0.0
      %v2263 = vmax.f32 %v2251, 0.0
      %v2264 = vmax.f32 %v2252, 0.0
      %v2265 = vmax.f32 %v2253, 0.0
      %v2266 = vmax.f32 %v2254, 0.0
      %v2267 = vmax.f32 %v2255, 0.0
      %v2268 = vmax.f32 %v2256, 0.0
      %v2269 = vmax.f32 %v2257, 0.0
      %v2270 = vld [vmem:[%s5] sm:$0x7]
      %v2272 = vlaneseq
      %v2273 = vshrl.u32 %v2272, 7
      %v2274 = vsub.s32 0, %v2273
      %v2275 = vrot.slane %v2270, %v2274
      %v2276 = vlaneseq
      %v2277 = vshrl.u32 %v2276, 7
      %v2278 = vsub.s32 1, %v2277
      %v2279 = vrot.slane %v2270, %v2278
      %v2280 = vlaneseq
      %v2281 = vshrl.u32 %v2280, 7
      %v2282 = vsub.s32 2, %v2281
      %v2283 = vrot.slane %v2270, %v2282
      %v2287 = vmul.f32 %v2258, %v2275
      %v2288 = vmul.f32 %v2259, %v2279
      %v2289 = vmul.f32 %v2260, %v2283
      %v2290 = vmul.f32 %v2261, %v2275
      %v2291 = vmul.f32 %v2262, %v2279
      %v2292 = vmul.f32 %v2263, %v2283
      %v2293 = vmul.f32 %v2264, %v2275
      %v2294 = vmul.f32 %v2265, %v2279
      %v2295 = vmul.f32 %v2266, %v2283
      %v2296 = vmul.f32 %v2267, %v2275
      %v2297 = vmul.f32 %v2268, %v2279
      %v2298 = vmul.f32 %v2269, %v2283
      %v2299 = vadd.f32 %v2287, %v2288
      %vm2300 = vcmask 261120
      %v2301 = vsel %vm2300, %v2289, 0.0
      %v2302 = vadd.f32 %v2299, %v2301
      %2303 = vadd.xlane.f32.xlu0 %v2302
      %v2304 = vpop.xlane.xlu0 %2303
      %v2305 = vadd.f32 %v2290, %v2291
      %v2306 = vsel %vm2300, %v2292, 0.0
      %v2307 = vadd.f32 %v2305, %v2306
      %2308 = vadd.xlane.f32.xlu0 %v2307
      %v2309 = vpop.xlane.xlu0 %2308
      %v2310 = vadd.f32 %v2293, %v2294
      %v2311 = vsel %vm2300, %v2295, 0.0
      %v2312 = vadd.f32 %v2310, %v2311
      %2313 = vadd.xlane.f32.xlu0 %v2312
      %v2314 = vpop.xlane.xlu0 %2313
      %v2315 = vadd.f32 %v2296, %v2297
      %v2316 = vsel %vm2300, %v2298, 0.0
      %v2317 = vadd.f32 %v2315, %v2316
      %2318 = vadd.xlane.f32.xlu0 %v2317
      %v2319 = vpop.xlane.xlu0 %2318
      %v2320 = vld [vmem:[%s3] sm:$0xff]
      %v2321 = vld [vmem:[%s3 + $0x8] sm:$0x3]
      %v2322 = vld [vmem:[%s4] sm:$0xff]
      %v2323 = vld [vmem:[%s4 + $0x8] sm:$0x3]
      %v2325 = vsel %vm2300, %v2320, 0
      %v2328 = vsel %vm2300, %v2321, 0
      %2330 = vmatprep.subr.mxu0 0.0
      %2331 = vmatpush1.msra.mxu0 %v2304
      %2332 = vmatprep.subr.mxu0 0.0
      %2333 = vmatpush1.msra.mxu0 %v2309
      %2334 = vmatprep.subr.mxu0 0.0
      %2335 = vmatpush1.msra.mxu0 %v2314
      %2336 = vmatprep.subr.mxu0 0.0
      %2337 = vmatpush1.msra.mxu0 %v2319
      %2338 = vmatprep.subr.mxu0 0.0
      %2339 = vmatpush1.msra.mxu0 0.0
      %2340 = vmatprep.subr.mxu0 0.0
      %2341 = vmatpush1.msra.mxu0 0.0
      %2342 = vmatprep.subr.mxu0 0.0
      %2343 = vmatpush1.msra.mxu0 0.0
      %2344 = vmatprep.subr.mxu0 0.0
      %2345 = vmatpush1.msra.mxu0 0.0
      %2346 = vmatprep.subr.mxu0 0.0
      %2347 = vmatpush1.msra.mxu0 0.0
      %2348 = vmatprep.subr.mxu0 0.0
      %2349 = vmatpush1.msra.mxu0 0.0
      %2350 = vmatprep.subr.mxu0 0.0
      %2351 = vmatpush1.msra.mxu0 0.0
      %2352 = vmatprep.subr.mxu0 0.0
      %2353 = vmatpush1.msra.mxu0 0.0
      %2354 = vmatprep.subr.mxu0 0.0
      %2355 = vmatpush1.msra.mxu0 0.0
      %2356 = vmatprep.subr.mxu0 0.0
      %2357 = vmatpush1.msra.mxu0 0.0
      %2358 = vmatprep.subr.mxu0 0.0
      %2359 = vmatpush1.msra.mxu0 0.0
      %2360 = vmatprep.subr.mxu0 0.0
      %2361 = vmatpush1.msra.mxu0 0.0
      %2362 = vmatprep.subr.mxu0 0.0
      %2363 = vmatpush1.msra.mxu0 0.0
      %2364 = vmatprep.subr.mxu0 0.0
      %2365 = vmatpush1.msra.mxu0 0.0
      %2366 = vmatprep.subr.mxu0 0.0
      %2367 = vmatpush1.msra.mxu0 0.0
      %2368 = vmatprep.subr.mxu0 0.0
      %2369 = vmatpush1.msra.mxu0 0.0
      %2370 = vmatprep.subr.mxu0 0.0
      %2371 = vmatpush1.msra.mxu0 0.0
      %2372 = vmatprep.subr.mxu0 0.0
      %2373 = vmatpush1.msra.mxu0 0.0
      %2374 = vmatprep.subr.mxu0 0.0
      %2375 = vmatpush1.msra.mxu0 0.0
      %2376 = vmatprep.subr.mxu0 0.0
      %2377 = vmatpush1.msra.mxu0 0.0
      %2378 = vmatprep.subr.mxu0 0.0
      %2379 = vmatpush1.msra.mxu0 0.0
      %2380 = vmatprep.subr.mxu0 0.0
      %2381 = vmatpush1.msra.mxu0 0.0
      %2382 = vmatprep.subr.mxu0 0.0
      %2383 = vmatpush1.msra.mxu0 0.0
      %2384 = vmatprep.subr.mxu0 0.0
      %2385 = vmatpush1.msra.mxu0 0.0
      %2386 = vmatprep.subr.mxu0 0.0
      %2387 = vmatpush1.msra.mxu0 0.0
      %2388 = vmatprep.subr.mxu0 0.0
      %2389 = vmatpush1.msra.mxu0 0.0
      %2390 = vmatprep.subr.mxu0 0.0
      %2391 = vmatpush1.msra.mxu0 0.0
      %2392 = vmatprep.subr.mxu0 0.0
      %2393 = vmatpush1.msra.mxu0 0.0
      %2394 = vmatprep.mubr.f32.mxu0 0.0
      %2395 = vmatmul.mubr.f32.gmra.mrb[0].mxu0 %v2325
      %v2396 = vpop.f32.mrb[0].mxu0
      %v2397 = vadd.f32 %v2322, %v2396
      %v2398 = vpop.f32.mrb[0].mxu0
      %2399 = vmatprep.mubr.f32.mxu0 0.0
      %2400 = vmatmul.mubr.f32.gmra.mrb[0].mxu0 %v2328
      %v2401 = vpop.f32.mrb[0].mxu0
      %v2402 = vadd.f32 %v2323, %v2401
      %v2403 = vpop.f32.mrb[0].mxu0
      %2404 = vdwg.mxu0
      %vm2405 = vcmask 7168
      %2406 = vst.msk [vmem:[%s251] sm:$0xff] %vm2405, %v2397
      %vm2407 = vcmask 1024
      %2408 = vst.msk [vmem:[%s251 + $0x8] sm:$0x3] %vm2407, %v2402
      %p2409 = scmp.lt.s32.totalorder %s17, 1
      %s2410 = scalar_select %p2409, %s17, 1
      %s2411 = smul.addr %s2410, 2
      %s2412 = smul.addr %s2411, 8
      %s2413 = scalar_lea.vmem %s6, %s2412
      // Predicated region
      $region45: #{network_forward.1} parent=43 // pred_check
        %p2414 = pneg %p166
      $region46: #{network_forward.1} parent=43 // pred_check_branch
        %2416 = sbr.rel (%p2414) target = $region48
      $region47: #{network_forward.1} parent=43 // pred_region
        _
      $region48: #{network_forward.1} parent=43 // pred_fallthru
        _
    $region44: #{network_forward.1} parent=5 // pred_fallthru
      _
    %p2417 = scmp.le.s32.totalorder 2, %s12
    // Predicated region
    $region49: #{network_forward.1} parent=5 // pred_check
      %p2418 = pneg %p2417
    $region50: #{network_forward.1} parent=5 // pred_check_branch
      %2420 = sbr.rel (%p2418) target = $region52
    $region51: #{network_forward.1} parent=5 // pred_region
      %s2421 = ssub.s32 %s12, 2
      // Predicated region
      $region53: #{network_forward.1} parent=51 // pred_check
        %p2422 = pneg %p172
      $region54: #{network_forward.1} parent=51 // pred_check_branch
        %2424 = sbr.rel (%p2422) target = $region56
      $region55: #{network_forward.1} parent=51 // pred_region
        %p2425 = scmp.lt.s32.totalorder %s18, 1
        %s2426 = scalar_select %p2425, %s18, 1
        %s2427 = smul.addr %s2426, 2
        %s2428 = smul.addr %s2427, 8
        %s2429 = scalar_lea.vmem %s6, %s2428
      $region56: #{network_forward.1} parent=51 // pred_fallthru
        _
    $region52: #{network_forward.1} parent=5 // pred_fallthru
      _
  $region6: #{network_forward.1} parent=0 // loop_footer
    %s16 = sadd.s32 1, %s12
  $region7: #{network_forward.1} parent=0 // loop_footer_branch
    %11 = sbr.rel target = $region3
  $region8: #{network_forward.1} parent=0 // loop_exit
    _

</llo_original>
